<compile_context>
chip_gen: v7x
topology: tpu7x:2x2x1
jax: 0.10.0
libtpu: 0.0.40
codegen_flags: <defaults>
</compile_context>

<pallas_src>
import functools

import jax
import jax.numpy as jnp
from jax.experimental import pallas as pl
from jax.experimental.pallas import tpu as pltpu

_LANE = 128  # N and every channel dim are padded to a multiple of this


def _round_up(x, m):
    return (x + m - 1) // m * m


def _vmem_capacity_bytes():
    """Physical per-core VMEM with a conservative fallback (v7x = 64 MiB)."""
    try:
        info = pltpu.get_tpu_info()
        for attr in ("vmem_capacity_bytes", "vmem_size_bytes", "vmem_bytes"):
            v = getattr(info, attr, None)
            if v:
                return int(v)
    except Exception:
        pass
    return 64 * 1024 * 1024


def _pick_block_rows(n_pad):
    for cand in (512, 256, 128):
        if n_pad % cand == 0:
            return cand
    return n_pad  # unreachable: n_pad is a multiple of 128


def _vmem_limit_bytes(n_pad, layer_dims_pad):
    cin0_pad = layer_dims_pad[0][0]
    hid_pad = layer_dims_pad[0][1]
    cout_pad = layer_dims_pad[-1][1]
    widest = max(co for _, co in layer_dims_pad)

    need = 0
    need += n_pad * n_pad * 2                 # resident A scratch (single copy)
    need += n_pad * hid_pad * 2               # inter-layer activation scratch
    need += 2 * n_pad * cin0_pad * 2          # X input (BlockSpec double-buffers)
    for cip, cop in layer_dims_pad:
        need += 2 * (cip * cop * 2 + cop * 4)  # W (bf16) + bias (f32), x2 bufs
    need += 2 * n_pad * cout_pad * 4          # f32 output slab, x2 bufs
    need += 2 * n_pad * widest * 4            # transient f32 layer intermediates
    need += 8 * 1024 * 1024                   # compiler-internal headroom

    cap = _vmem_capacity_bytes()
    if need > cap:
        # TODO(synk): tiled two-pass row-block-grid variant (parallel row axis
        # for v7x's 2 TensorCores) for graphs that do not fit VMEM.
        raise NotImplementedError(
            f"graph needs ~{need >> 20} MiB VMEM > {cap >> 20} MiB capacity; "
            "tiled GCN variant not implemented")
    return int(need)


def _gcn_fused_kernel(*refs, num_layers, agg_first, blk_rows):
    """Fused multi-layer GCN forward, fully VMEM-resident.

    refs layout:
      refs[0]                  a_hbm  [N, N]       bf16 adjacency (HBM, pl.ANY)
      refs[1]                  x_ref  [N, Cin0]    bf16 input features
      refs[2+2l], refs[3+2l]   w_l [Cin_l, Cout_l] bf16, b_l [1, Cout_l] f32
      refs[2+2L]               o_ref  [N, Cout_L]  f32 output
      refs[3+2L]               a_vmem [N, N]       bf16 resident-A scratch
      refs[4+2L]               h_vmem [N, Chid]    bf16 activation scratch
      refs[5+2L]               sems   DMA semaphores, one per A row block
    """
    a_hbm = refs[0]
    x_ref = refs[1]
    w_refs = [refs[2 + 2 * l] for l in range(num_layers)]
    b_refs = [refs[3 + 2 * l] for l in range(num_layers)]
    o_ref = refs[2 + 2 * num_layers]
    a_vmem = refs[3 + 2 * num_layers]
    h_vmem = refs[4 + 2 * num_layers]
    sems = refs[5 + 2 * num_layers]

    n_pad = a_vmem.shape[0]
    n_blocks = n_pad // blk_rows

    def _a_copy(r):
        return pltpu.make_async_copy(
            a_hbm.at[pl.ds(r * blk_rows, blk_rows), :],
            a_vmem.at[pl.ds(r * blk_rows, blk_rows), :],
            sems.at[r],
        )

    # Issue every A row-block DMA up front (distinct destinations/semaphores);
    # the copies stream while layer-1 compute consumes blocks as they land.
    for r in range(n_blocks):
        _a_copy(r).start()

    # ---- Layer 0, streamed per A row block (hides the 2*N^2-byte A DMA) ----
    x = x_ref[...]
    w0 = w_refs[0][...]
    b0 = b_refs[0][...]
    if not agg_first[0]:
        # A @ (X @ W): pre-compute X@W while the first A block is in flight.
        hw0 = jnp.dot(x, w0, preferred_element_type=jnp.float32).astype(
            jnp.bfloat16)
    for r in range(n_blocks):
        _a_copy(r).wait()
        a_rows = a_vmem[pl.ds(r * blk_rows, blk_rows), :]
        if agg_first[0]:
            ax = jnp.dot(a_rows, x, preferred_element_type=jnp.float32)
            out = jnp.dot(ax.astype(jnp.bfloat16), w0,
                          preferred_element_type=jnp.float32)
        else:
            out = jnp.dot(a_rows, hw0, preferred_element_type=jnp.float32)
        out = jnp.maximum(out + b0, 0.0)          # bias + ReLU, f32 epilogue
        h_vmem[pl.ds(r * blk_rows, blk_rows), :] = out.astype(jnp.bfloat16)

    # ---- Layers 1..L-1 on the now-resident A (statically unrolled) ----
    for l in range(1, num_layers):
        w = w_refs[l][...]
        b = b_refs[l][...]
        h = h_vmem[...]
        if agg_first[l]:
            ah = jnp.dot(a_vmem[...], h, preferred_element_type=jnp.float32)
            out = jnp.dot(ah.astype(jnp.bfloat16), w,
                          preferred_element_type=jnp.float32)
        else:
            hw = jnp.dot(h, w, preferred_element_type=jnp.float32).astype(
                jnp.bfloat16)
            out = jnp.dot(a_vmem[...], hw, preferred_element_type=jnp.float32)
        out = out + b
        if l == num_layers - 1:
            o_ref[...] = out.astype(o_ref.dtype)
        else:
            h_vmem[...] = jnp.maximum(out, 0.0).astype(jnp.bfloat16)


def gcn_forward_fused(a_bf16, x_bf16, weights, biases, *, agg_first, blk_rows,
                      vmem_limit_bytes):
    """One pallas_call running every GCN layer back-to-back in VMEM."""
    num_layers = len(weights)
    n_pad = a_bf16.shape[0]
    cin0_pad = x_bf16.shape[1]
    hid_pad = weights[0].shape[1]
    cout_pad = weights[-1].shape[1]
    n_blocks = n_pad // blk_rows

    in_specs = [
        pl.BlockSpec(memory_space=pl.ANY),                       # A stays in HBM
        pl.BlockSpec((n_pad, cin0_pad), lambda i: (0, 0)),       # X
    ]
    operands = [a_bf16, x_bf16]
    for w, b in zip(weights, biases):
        in_specs.append(pl.BlockSpec(w.shape, lambda i: (0, 0)))
        in_specs.append(pl.BlockSpec(b.shape, lambda i: (0, 0)))
        operands.extend([w, b])

    kernel = functools.partial(_gcn_fused_kernel, num_layers=num_layers,
                               agg_first=tuple(agg_first), blk_rows=blk_rows)
    return pl.pallas_call(
        kernel,
        out_shape=jax.ShapeDtypeStruct((n_pad, cout_pad), jnp.float32),
        grid_spec=pltpu.PrefetchScalarGridSpec(
            num_scalar_prefetch=0,
            grid=(1,),
            in_specs=in_specs,
            out_specs=pl.BlockSpec((n_pad, cout_pad), lambda i: (0, 0)),
            scratch_shapes=[
                pltpu.VMEM((n_pad, n_pad), jnp.bfloat16),    # resident A (1 buf)
                pltpu.VMEM((n_pad, hid_pad), jnp.bfloat16),  # activation scratch
                pltpu.SemaphoreType.DMA((n_blocks,)),
            ],
        ),
        compiler_params=pltpu.CompilerParams(
            dimension_semantics=("arbitrary",),
            vmem_limit_bytes=vmem_limit_bytes,
        ),
    )(*operands)


def normalize_adjacency(adj):
    """Dense GCN normalization D^-1/2 (A + I) D^-1/2, kept in f32."""
    n = adj.shape[0]
    a_hat = adj.astype(jnp.float32) + jnp.eye(n, dtype=jnp.float32)
    deg = jnp.sum(a_hat, axis=1)
    d_inv_sqrt = jnp.where(deg > 0, 1.0 / jnp.sqrt(deg), 0.0)
    return a_hat * d_inv_sqrt[:, None] * d_inv_sqrt[None, :]


def glorot(key, shape):
    fan_in, fan_out = shape
    limit = jnp.sqrt(6.0 / (fan_in + fan_out))
    return jax.random.uniform(key, shape, jnp.float32, -limit, limit)


@functools.partial(jax.jit, static_argnames=(
    "in_channels", "n", "agg_first", "blk_rows", "vmem_limit_bytes"))
def _gcn_apply(a_bf16, x, weights, biases, *, in_channels, n, agg_first,
               blk_rows, vmem_limit_bytes):
    """Pad + cast x and run the fused kernel, all inside one jit."""
    n_pad = a_bf16.shape[0]
    cin0_pad = weights[0].shape[0]
    x_pad = jnp.zeros((n_pad, cin0_pad), jnp.bfloat16)
    x_pad = x_pad.at[:n, :in_channels].set(x.astype(jnp.bfloat16))
    return gcn_forward_fused(a_bf16, x_pad, weights, biases,
                             agg_first=agg_first, blk_rows=blk_rows,
                             vmem_limit_bytes=vmem_limit_bytes)


class GCNPallas:
    def __init__(self, key, in_channels, hidden_channels, out_channels,
                 num_layers, dropout, cold_dropout=False):
        assert num_layers >= 2
        layer_dims = [(in_channels, hidden_channels)]
        layer_dims += [(hidden_channels, hidden_channels)] * (num_layers - 2)
        layer_dims += [(hidden_channels, out_channels)]
        self.layer_dims = layer_dims
        self.in_channels = in_channels
        self.out_channels = out_channels
        self.dropout = dropout
        self.cold_dropout = cold_dropout

        # Per-layer lane-dense padded widths (NOT one global C_pad): the N^2
        # term A @ H scales with activation width, so each dim is padded only
        # to its own 128-multiple.  Zero padding is numerically exact.
        self.layer_dims_pad = tuple(
            (_round_up(ci, _LANE), _round_up(co, _LANE)) for ci, co in layer_dims)

        keys = jax.random.split(key, num_layers)
        weights, biases, agg_first = [], [], []
        for k, (ci, co), (cip, cop) in zip(keys, layer_dims, self.layer_dims_pad):
            w = glorot(k, (ci, co))
            w_pad = jnp.zeros((cip, cop), jnp.float32).at[:ci, :co].set(w)
            weights.append(w_pad.astype(jnp.bfloat16))
            biases.append(jnp.zeros((1, cop), jnp.float32))
            # Matmul association per layer, decided on the padded dims the MXU
            # actually sees: (A@H)@W iff Cin_pad < Cout_pad, else A@(H@W).
            agg_first.append(cip < cop)
        self.weights = tuple(weights)
        self.biases = tuple(biases)
        self.agg_first = tuple(agg_first)

        # GCNConv(cached=True): normalized adjacency is computed once and
        # reused across forward calls.  Like PyG's cache this is keyed on
        # shape only; a different same-size graph reuses the cached a_norm.
        self._a_norm_cache = None

    def __call__(self, x, adj):
        n = x.shape[0]
        # Lane-dense N: A's columns and the K dim of A @ H map to lanes.
        n_pad = _round_up(max(n, _LANE), _LANE)

        if self._a_norm_cache is None or self._a_norm_cache.shape[0] != n_pad:
            a_norm = normalize_adjacency(adj)
            a_pad = jnp.zeros((n_pad, n_pad), jnp.float32).at[:n, :n].set(a_norm)
            self._a_norm_cache = a_pad.astype(jnp.bfloat16)

        blk_rows = _pick_block_rows(n_pad)
        vmem_limit = _vmem_limit_bytes(n_pad, self.layer_dims_pad)

        out_pad = _gcn_apply(self._a_norm_cache, x, self.weights, self.biases,
                             in_channels=self.in_channels, n=n,
                             agg_first=self.agg_first, blk_rows=blk_rows,
                             vmem_limit_bytes=vmem_limit)
        return out_pad[:n, :self.out_channels]


if __name__ == "__main__":
    key = jax.random.PRNGKey(0)
    k_x, k_adj, k_params = jax.random.split(key, 3)

    num_nodes = 16
    in_channels = 8
    hidden_channels = 32
    out_channels = 4
    num_layers = 3
    dropout = 0.5

    # node features [N, C_in]
    x = jax.random.normal(k_x, (num_nodes, in_channels), jnp.float32)
    # random symmetric binary adjacency [N, N], no self loops
    rand = jax.random.uniform(k_adj, (num_nodes, num_nodes))
    adj = (rand < 0.3).astype(jnp.float32)
    adj = jnp.maximum(adj, adj.T)
    adj = adj * (1.0 - jnp.eye(num_nodes, dtype=jnp.float32))

    model = GCNPallas(k_params, in_channels, hidden_channels, out_channels,
                      num_layers, dropout)

    out = model(x, adj)
    jax.block_until_ready(out)
    assert out.shape == (num_nodes, out_channels)
    assert bool(jnp.all(jnp.isfinite(out)))

    # Pure-JAX f32 reference (bf16 A / activations in the kernel -> loose tol).
    a_norm = normalize_adjacency(adj)
    h = x
    for l, ((ci, co), w, b) in enumerate(
            zip(model.layer_dims, model.weights, model.biases)):
        w_f32 = w[:ci, :co].astype(jnp.float32)
        h = a_norm @ (h @ w_f32) + b[0, :co]
        if l < num_layers - 1:
            h = jnp.maximum(h, 0.0)
    assert bool(jnp.allclose(out, h, atol=1e-1, rtol=1e-1))

    print("KERNEL_OK")
</pallas_src>

<mosaic_0001>
module attributes {stable_mosaic.version = 11 : i64} {
  func.func @_gcn_fused_kernel(%arg0: i32, %arg1: memref<128x128xbf16, #tpu.memory_space<any>>, %arg2: memref<128x128xbf16, #tpu.memory_space<vmem>>, %arg3: memref<128x128xbf16, #tpu.memory_space<vmem>>, %arg4: memref<1x128xf32, #tpu.memory_space<vmem>>, %arg5: memref<128x128xbf16, #tpu.memory_space<vmem>>, %arg6: memref<1x128xf32, #tpu.memory_space<vmem>>, %arg7: memref<128x128xbf16, #tpu.memory_space<vmem>>, %arg8: memref<1x128xf32, #tpu.memory_space<vmem>>, %arg9: memref<128x128xf32, #tpu.memory_space<vmem>>, %arg10: memref<128x128xbf16, #tpu.memory_space<vmem>>, %arg11: memref<128x128xbf16, #tpu.memory_space<vmem>>, %arg12: memref<1x!tpu.dma_semaphore, #tpu.memory_space<semaphore_mem>>) attributes {dimension_semantics = [#tpu.dimension_semantics<arbitrary>], iteration_bounds = array<i64: 1>, scalar_prefetch = 0 : i64, scratch_operands = 3 : i64, tpu.core_type = #tpu.core_type<tc>, window_params = [{}, {pipeline_mode = #tpu.pipeline_mode<synchronous>, transform_indices = @transform_1, window_bounds = array<i64: 128, 128>}, {pipeline_mode = #tpu.pipeline_mode<synchronous>, transform_indices = @transform_2, window_bounds = array<i64: 128, 128>}, {pipeline_mode = #tpu.pipeline_mode<synchronous>, transform_indices = @transform_3, window_bounds = array<i64: 1, 128>}, {pipeline_mode = #tpu.pipeline_mode<synchronous>, transform_indices = @transform_4, window_bounds = array<i64: 128, 128>}, {pipeline_mode = #tpu.pipeline_mode<synchronous>, transform_indices = @transform_5, window_bounds = array<i64: 1, 128>}, {pipeline_mode = #tpu.pipeline_mode<synchronous>, transform_indices = @transform_6, window_bounds = array<i64: 128, 128>}, {pipeline_mode = #tpu.pipeline_mode<synchronous>, transform_indices = @transform_7, window_bounds = array<i64: 1, 128>}, {pipeline_mode = #tpu.pipeline_mode<synchronous>, transform_indices = @transform_8, window_bounds = array<i64: 128, 128>}]} {
    %c0_i32 = arith.constant 0 : i32
    %c0_i32_0 = arith.constant 0 : i32
    %c0_i32_1 = arith.constant 0 : i32
    %0 = tpu.memref_slice %arg1[%c0_i32_0, %c0_i32_1] : memref<128x128xbf16, #tpu.memory_space<any>> -> memref<128x128xbf16, #tpu.memory_space<any>>
    %c0_i32_2 = arith.constant 0 : i32
    %c0_i32_3 = arith.constant 0 : i32
    %1 = tpu.memref_slice %arg10[%c0_i32_2, %c0_i32_3] : memref<128x128xbf16, #tpu.memory_space<vmem>> -> memref<128x128xbf16, #tpu.memory_space<vmem>>
    %2 = tpu.memref_slice %arg12[%c0_i32] : memref<1x!tpu.dma_semaphore, #tpu.memory_space<semaphore_mem>> -> memref<1x!tpu.dma_semaphore, #tpu.memory_space<semaphore_mem>>
    %3 = tpu.memref_squeeze %2 : memref<1x!tpu.dma_semaphore, #tpu.memory_space<semaphore_mem>> -> memref<!tpu.dma_semaphore, #tpu.memory_space<semaphore_mem>>
    tpu.enqueue_dma source(%0 : memref<128x128xbf16, #tpu.memory_space<any>>) target(%1 : memref<128x128xbf16, #tpu.memory_space<vmem>>) target_semaphore(%3 : memref<!tpu.dma_semaphore, #tpu.memory_space<semaphore_mem>>)
    %c0 = arith.constant 0 : index
    %c0_4 = arith.constant 0 : index
    %4 = vector.load %arg2[%c0, %c0_4] : memref<128x128xbf16, #tpu.memory_space<vmem>>, vector<128x128xbf16>
    %c0_5 = arith.constant 0 : index
    %c0_6 = arith.constant 0 : index
    %5 = vector.load %arg3[%c0_5, %c0_6] : memref<128x128xbf16, #tpu.memory_space<vmem>>, vector<128x128xbf16>
    %c0_7 = arith.constant 0 : index
    %c0_8 = arith.constant 0 : index
    %6 = vector.load %arg4[%c0_7, %c0_8] : memref<1x128xf32, #tpu.memory_space<vmem>>, vector<1x128xf32>
    %cst = arith.constant dense<0.000000e+00> : vector<128x128xf32>
    %7 = tpu.matmul %4, %5, %cst {dimension_numbers = #tpu.dot_dimension_numbers<[1], [0], [0], [1], [0, 0, 1, 1], [], []>} : vector<128x128xbf16>, vector<128x128xbf16>, vector<128x128xf32> -> vector<128x128xf32>
    %8 = arith.truncf %7 : vector<128x128xf32> to vector<128x128xbf16>
    %c0_i32_9 = arith.constant 0 : i32
    %c0_i32_10 = arith.constant 0 : i32
    %c0_i32_11 = arith.constant 0 : i32
    %9 = tpu.memref_slice %arg1[%c0_i32_10, %c0_i32_11] : memref<128x128xbf16, #tpu.memory_space<any>> -> memref<128x128xbf16, #tpu.memory_space<any>>
    %c0_i32_12 = arith.constant 0 : i32
    %c0_i32_13 = arith.constant 0 : i32
    %10 = tpu.memref_slice %arg10[%c0_i32_12, %c0_i32_13] : memref<128x128xbf16, #tpu.memory_space<vmem>> -> memref<128x128xbf16, #tpu.memory_space<vmem>>
    %11 = tpu.memref_slice %arg12[%c0_i32_9] : memref<1x!tpu.dma_semaphore, #tpu.memory_space<semaphore_mem>> -> memref<1x!tpu.dma_semaphore, #tpu.memory_space<semaphore_mem>>
    %12 = tpu.memref_squeeze %11 : memref<1x!tpu.dma_semaphore, #tpu.memory_space<semaphore_mem>> -> memref<!tpu.dma_semaphore, #tpu.memory_space<semaphore_mem>>
    tpu.wait_dma2 semaphore(%12 : memref<!tpu.dma_semaphore, #tpu.memory_space<semaphore_mem>>) src(%9 : memref<128x128xbf16, #tpu.memory_space<any>>) dst(%10 : memref<128x128xbf16, #tpu.memory_space<vmem>>)
    %c0_14 = arith.constant 0 : index
    %c0_15 = arith.constant 0 : index
    %13 = vector.load %arg10[%c0_14, %c0_15] : memref<128x128xbf16, #tpu.memory_space<vmem>>, vector<128x128xbf16>
    %cst_16 = arith.constant dense<0.000000e+00> : vector<128x128xf32>
    %14 = tpu.matmul %13, %8, %cst_16 {dimension_numbers = #tpu.dot_dimension_numbers<[1], [0], [0], [1], [0, 0, 1, 1], [], []>} : vector<128x128xbf16>, vector<128x128xbf16>, vector<128x128xf32> -> vector<128x128xf32>
    %15 = vector.broadcast %6 : vector<1x128xf32> to vector<128x128xf32>
    %16 = arith.addf %14, %15 : vector<128x128xf32>
    %cst_17 = arith.constant 0.000000e+00 : f32
    %17 = vector.broadcast %cst_17 : f32 to vector<128x128xf32>
    %18 = arith.maximumf %16, %17 : vector<128x128xf32>
    %19 = arith.truncf %18 : vector<128x128xf32> to vector<128x128xbf16>
    %c0_18 = arith.constant 0 : index
    %c0_19 = arith.constant 0 : index
    %20 = vector.load %arg11[%c0_18, %c0_19] : memref<128x128xbf16, #tpu.memory_space<vmem>>, vector<128x128xbf16>
    tpu.vector_store %arg11[%c0_18, %c0_19], %19 {strides = array<i32>} : memref<128x128xbf16, #tpu.memory_space<vmem>>, vector<128x128xbf16>,
    %c0_20 = arith.constant 0 : index
    %c0_21 = arith.constant 0 : index
    %21 = vector.load %arg5[%c0_20, %c0_21] : memref<128x128xbf16, #tpu.memory_space<vmem>>, vector<128x128xbf16>
    %c0_22 = arith.constant 0 : index
    %c0_23 = arith.constant 0 : index
    %22 = vector.load %arg6[%c0_22, %c0_23] : memref<1x128xf32, #tpu.memory_space<vmem>>, vector<1x128xf32>
    %c0_24 = arith.constant 0 : index
    %c0_25 = arith.constant 0 : index
    %23 = vector.load %arg11[%c0_24, %c0_25] : memref<128x128xbf16, #tpu.memory_space<vmem>>, vector<128x128xbf16>
    %cst_26 = arith.constant dense<0.000000e+00> : vector<128x128xf32>
    %24 = tpu.matmul %23, %21, %cst_26 {dimension_numbers = #tpu.dot_dimension_numbers<[1], [0], [0], [1], [0, 0, 1, 1], [], []>} : vector<128x128xbf16>, vector<128x128xbf16>, vector<128x128xf32> -> vector<128x128xf32>
    %25 = arith.truncf %24 : vector<128x128xf32> to vector<128x128xbf16>
    %c0_27 = arith.constant 0 : index
    %c0_28 = arith.constant 0 : index
    %26 = vector.load %arg10[%c0_27, %c0_28] : memref<128x128xbf16, #tpu.memory_space<vmem>>, vector<128x128xbf16>
    %cst_29 = arith.constant dense<0.000000e+00> : vector<128x128xf32>
    %27 = tpu.matmul %26, %25, %cst_29 {dimension_numbers = #tpu.dot_dimension_numbers<[1], [0], [0], [1], [0, 0, 1, 1], [], []>} : vector<128x128xbf16>, vector<128x128xbf16>, vector<128x128xf32> -> vector<128x128xf32>
    %28 = vector.broadcast %22 : vector<1x128xf32> to vector<128x128xf32>
    %29 = arith.addf %27, %28 : vector<128x128xf32>
    %cst_30 = arith.constant 0.000000e+00 : f32
    %30 = vector.broadcast %cst_30 : f32 to vector<128x128xf32>
    %31 = arith.maximumf %29, %30 : vector<128x128xf32>
    %32 = arith.truncf %31 : vector<128x128xf32> to vector<128x128xbf16>
    %c0_31 = arith.constant 0 : index
    %c0_32 = arith.constant 0 : index
    %33 = vector.load %arg11[%c0_31, %c0_32] : memref<128x128xbf16, #tpu.memory_space<vmem>>, vector<128x128xbf16>
    tpu.vector_store %arg11[%c0_31, %c0_32], %32 {strides = array<i32>} : memref<128x128xbf16, #tpu.memory_space<vmem>>, vector<128x128xbf16>,
    %c0_33 = arith.constant 0 : index
    %c0_34 = arith.constant 0 : index
    %34 = vector.load %arg7[%c0_33, %c0_34] : memref<128x128xbf16, #tpu.memory_space<vmem>>, vector<128x128xbf16>
    %c0_35 = arith.constant 0 : index
    %c0_36 = arith.constant 0 : index
    %35 = vector.load %arg8[%c0_35, %c0_36] : memref<1x128xf32, #tpu.memory_space<vmem>>, vector<1x128xf32>
    %c0_37 = arith.constant 0 : index
    %c0_38 = arith.constant 0 : index
    %36 = vector.load %arg11[%c0_37, %c0_38] : memref<128x128xbf16, #tpu.memory_space<vmem>>, vector<128x128xbf16>
    %cst_39 = arith.constant dense<0.000000e+00> : vector<128x128xf32>
    %37 = tpu.matmul %36, %34, %cst_39 {dimension_numbers = #tpu.dot_dimension_numbers<[1], [0], [0], [1], [0, 0, 1, 1], [], []>} : vector<128x128xbf16>, vector<128x128xbf16>, vector<128x128xf32> -> vector<128x128xf32>
    %38 = arith.truncf %37 : vector<128x128xf32> to vector<128x128xbf16>
    %c0_40 = arith.constant 0 : index
    %c0_41 = arith.constant 0 : index
    %39 = vector.load %arg10[%c0_40, %c0_41] : memref<128x128xbf16, #tpu.memory_space<vmem>>, vector<128x128xbf16>
    %cst_42 = arith.constant dense<0.000000e+00> : vector<128x128xf32>
    %40 = tpu.matmul %39, %38, %cst_42 {dimension_numbers = #tpu.dot_dimension_numbers<[1], [0], [0], [1], [0, 0, 1, 1], [], []>} : vector<128x128xbf16>, vector<128x128xbf16>, vector<128x128xf32> -> vector<128x128xf32>
    %41 = vector.broadcast %35 : vector<1x128xf32> to vector<128x128xf32>
    %42 = arith.addf %40, %41 : vector<128x128xf32>
    %c0_43 = arith.constant 0 : index
    %c0_44 = arith.constant 0 : index
    %43 = vector.load %arg9[%c0_43, %c0_44] : memref<128x128xf32, #tpu.memory_space<vmem>>, vector<128x128xf32>
    tpu.vector_store %arg9[%c0_43, %c0_44], %42 {strides = array<i32>} : memref<128x128xf32, #tpu.memory_space<vmem>>, vector<128x128xf32>,
    return
  }
  func.func @transform_1(%arg0: i32) -> (i32, i32) {
    %c0_i32 = arith.constant 0 : i32
    %c0_i32_0 = arith.constant 0 : i32
    %c0_i32_1 = arith.constant 0 : i32
    return %c0_i32, %c0_i32_0 : i32, i32
  }
  func.func @transform_2(%arg0: i32) -> (i32, i32) {
    %c0_i32 = arith.constant 0 : i32
    %c0_i32_0 = arith.constant 0 : i32
    %c0_i32_1 = arith.constant 0 : i32
    return %c0_i32, %c0_i32_0 : i32, i32
  }
  func.func @transform_3(%arg0: i32) -> (i32, i32) {
    %c0_i32 = arith.constant 0 : i32
    %c0_i32_0 = arith.constant 0 : i32
    %c0_i32_1 = arith.constant 0 : i32
    return %c0_i32, %c0_i32_0 : i32, i32
  }
  func.func @transform_4(%arg0: i32) -> (i32, i32) {
    %c0_i32 = arith.constant 0 : i32
    %c0_i32_0 = arith.constant 0 : i32
    %c0_i32_1 = arith.constant 0 : i32
    return %c0_i32, %c0_i32_0 : i32, i32
  }
  func.func @transform_5(%arg0: i32) -> (i32, i32) {
    %c0_i32 = arith.constant 0 : i32
    %c0_i32_0 = arith.constant 0 : i32
    %c0_i32_1 = arith.constant 0 : i32
    return %c0_i32, %c0_i32_0 : i32, i32
  }
  func.func @transform_6(%arg0: i32) -> (i32, i32) {
    %c0_i32 = arith.constant 0 : i32
    %c0_i32_0 = arith.constant 0 : i32
    %c0_i32_1 = arith.constant 0 : i32
    return %c0_i32, %c0_i32_0 : i32, i32
  }
  func.func @transform_7(%arg0: i32) -> (i32, i32) {
    %c0_i32 = arith.constant 0 : i32
    %c0_i32_0 = arith.constant 0 : i32
    %c0_i32_1 = arith.constant 0 : i32
    return %c0_i32, %c0_i32_0 : i32, i32
  }
  func.func @transform_8(%arg0: i32) -> (i32, i32) {
    %c0_i32 = arith.constant 0 : i32
    %c0_i32_0 = arith.constant 0 : i32
    %c0_i32_1 = arith.constant 0 : i32
    return %c0_i32, %c0_i32_0 : i32, i32
  }
}

</mosaic_0001>

<llo_original>
// kernel: _gcn_apply.1
$region0: #{_gcn_apply.1}
  #allocation0 [shape = 'u32[]', space=smem, size = 0x4, offset = 0x4, fixed_abs, tag = 'smem constant byte address 0x4 - core index']
  #allocation1 [shape = 'u32[144,128]{1,0:T(1,128)}', space=vmem, size = 0x12000, scoped, tag = 'internal scratch']
  #allocation2 [shape = 'bf16[128,128]{1,0:T(16,128)(2,1)}', space=vmem, size = 0x8000, scoped, tag = 'scratch operand']
  #allocation3 [shape = 'bf16[128,128]{1,0:T(16,128)(2,1)}', space=vmem, size = 0x8000, scoped, tag = 'scratch operand']
  #allocation4 [shape = 's32[1]{0}', space=sflag, size = 0x4, scoped, tag = 'scratch operand']
  #allocation12 [shape = 's32[]', space=sflag, size = 0x4, offset = 0, fixed_abs, tag = 'sflag constant byte address 0x0 - dummy sync flag']
  %s0 = inlined_call_operand.vmem [shape: bf16[128,128], index: 0, kind: input, shape index: {}]
  %s1 = inlined_call_operand.vmem [shape: bf16[128,128], index: 1, kind: input, shape index: {}]
  %s2 = inlined_call_operand.hbm [shape: bf16[128,128], index: 2, kind: input, shape index: {}]
  %s3 = inlined_call_operand.vmem [shape: f32[1,128], index: 3, kind: input, shape index: {}]
  %s4 = inlined_call_operand.hbm [shape: bf16[128,128], index: 4, kind: input, shape index: {}]
  %s5 = inlined_call_operand.vmem [shape: f32[1,128], index: 5, kind: input, shape index: {}]
  %s6 = inlined_call_operand.hbm [shape: bf16[128,128], index: 6, kind: input, shape index: {}]
  %s7 = inlined_call_operand.vmem [shape: f32[1,128], index: 7, kind: input, shape index: {}]
  %s8 = inlined_call_operand.hbm [shape: f32[128,128], index: 8, kind: output, shape index: {}]
  %s9 = sld [smem:[#allocation0]]
  $region84: #{_gcn_apply.1} parent=0
    _
  %s11 = ssub.s32 1, %s9
  %s12 = scalar_select 0, %s11, %s9
  $region1: #{_gcn_apply.1} parent=0
    #allocation5 [shape = 'u8[32768]{0}', space=vmem, size = 0x8000, scoped, tag = 'input window, operand 2, single buffered']
    #allocation6 [shape = 's32[1]{0}', space=sflag, size = 0x4, scoped, tag = 'scoped memory for _gcn_apply.1']
    #allocation7 [shape = 's32[1]{0}', space=sflag, size = 0x4, scoped, tag = 'scoped memory for _gcn_apply.1']
    #allocation8 [shape = 'u8[32768]{0}', space=vmem, size = 0x8000, scoped, tag = 'input window, operand 4, single buffered']
    #allocation9 [shape = 's32[1]{0}', space=sflag, size = 0x4, scoped, tag = 'scoped memory for _gcn_apply.1']
    #allocation10 [shape = 'u8[32768]{0}', space=vmem, size = 0x8000, scoped, tag = 'input window, operand 6, single buffered']
    #allocation11 [shape = 'u8[65536]{0}', space=vmem, size = 0x10000, scoped, tag = 'output window, operand 0, single buffered']
    %13 = vsyncpa [#allocation6], 0
    %14 = vsyncpa [#allocation9], 0
    %15 = vsyncpa [#allocation7], 0
    // Predicated region
    $region2: #{_gcn_apply.1} parent=1 // pred_check
      _
    $region3: #{_gcn_apply.1} parent=1 // pred_check_branch
      %17 = sbr.rel (0) target = $region5
    $region4: #{_gcn_apply.1} parent=1 // pred_region
      _
    $region5: #{_gcn_apply.1} parent=1 // pred_fallthru
      _
    // Predicated region
    $region6: #{_gcn_apply.1} parent=1 // pred_check
      _
    $region7: #{_gcn_apply.1} parent=1 // pred_check_branch
      %19 = sbr.rel (0) target = $region9
    $region8: #{_gcn_apply.1} parent=1 // pred_region
      %s21 = ssub.s32 1024, 1024
      %22 = vsyncadd [#allocation6], %s21
      %s23 = sshll.u32 [#allocation5], 4
      %s24 = int_to_ptr.vmem [resolvable:$true] %s23
      %29 = dma.hbm_to_vmem [thread:$0]  %s2, 1024, %s24, [#allocation6], 64, 64, 4
    $region9: #{_gcn_apply.1} parent=1 // pred_fallthru
      _
    // Predicated region
    $region10: #{_gcn_apply.1} parent=1 // pred_check
      _
    $region11: #{_gcn_apply.1} parent=1 // pred_check_branch
      %31 = sbr.rel (0) target = $region13
    $region12: #{_gcn_apply.1} parent=1 // pred_region
      _
    $region13: #{_gcn_apply.1} parent=1 // pred_fallthru
      _
    // Predicated region
    $region14: #{_gcn_apply.1} parent=1 // pred_check
      _
    $region15: #{_gcn_apply.1} parent=1 // pred_check_branch
      %33 = sbr.rel (0) target = $region17
    $region16: #{_gcn_apply.1} parent=1 // pred_region
      %s35 = ssub.s32 1024, 1024
      %36 = vsyncadd [#allocation9], %s35
      %s37 = sshll.u32 [#allocation8], 4
      %s38 = int_to_ptr.vmem [resolvable:$true] %s37
      %43 = dma.hbm_to_vmem [thread:$0]  %s4, 1024, %s38, [#allocation9], 64, 64, 4
    $region17: #{_gcn_apply.1} parent=1 // pred_fallthru
      _
    // Predicated region
    $region18: #{_gcn_apply.1} parent=1 // pred_check
      _
    $region19: #{_gcn_apply.1} parent=1 // pred_check_branch
      %45 = sbr.rel (0) target = $region21
    $region20: #{_gcn_apply.1} parent=1 // pred_region
      _
    $region21: #{_gcn_apply.1} parent=1 // pred_fallthru
      _
    // Predicated region
    $region22: #{_gcn_apply.1} parent=1 // pred_check
      _
    $region23: #{_gcn_apply.1} parent=1 // pred_check_branch
      %47 = sbr.rel (0) target = $region25
    $region24: #{_gcn_apply.1} parent=1 // pred_region
      %s49 = ssub.s32 1024, 1024
      %50 = vsyncadd [#allocation9], %s49
      %s51 = sshll.u32 [#allocation10], 4
      %s52 = int_to_ptr.vmem [resolvable:$true] %s51
      %57 = dma.hbm_to_vmem [thread:$0]  %s6, 1024, %s52, [#allocation9], 64, 64, 4
    $region25: #{_gcn_apply.1} parent=1 // pred_fallthru
      _
    // Predicated region
    $region26: #{_gcn_apply.1} parent=1 // pred_check
      _
    $region27: #{_gcn_apply.1} parent=1 // pred_check_branch
      %59 = sbr.rel (0) target = $region29
    $region28: #{_gcn_apply.1} parent=1 // pred_region
      _
    $region29: #{_gcn_apply.1} parent=1 // pred_fallthru
      _
    // Predicated region
    $region30: #{_gcn_apply.1} parent=1 // pred_check
      _
    $region31: #{_gcn_apply.1} parent=1 // pred_check_branch
      %61 = sbr.rel (0) target = $region33
    $region32: #{_gcn_apply.1} parent=1 // pred_region
      %62 = dma.done [#allocation6], 1024
    $region33: #{_gcn_apply.1} parent=1 // pred_fallthru
      _
    // Predicated region
    $region34: #{_gcn_apply.1} parent=1 // pred_check
      _
    $region35: #{_gcn_apply.1} parent=1 // pred_check_branch
      %64 = sbr.rel (0) target = $region37
    $region36: #{_gcn_apply.1} parent=1 // pred_region
      %65 = dma.done [#allocation9], 1024
    $region37: #{_gcn_apply.1} parent=1 // pred_fallthru
      _
    // Predicated region
    $region38: #{_gcn_apply.1} parent=1 // pred_check
      _
    $region39: #{_gcn_apply.1} parent=1 // pred_check_branch
      %67 = sbr.rel (0) target = $region41
    $region40: #{_gcn_apply.1} parent=1 // pred_region
      %68 = dma.done [#allocation9], 1024
    $region41: #{_gcn_apply.1} parent=1 // pred_fallthru
      _
    %p71 = scmp.lt.u32.totalorder 64, 8
    %p72 = pneg %p71
    // Predicated region
    $region42: #{_gcn_apply.1} parent=1 // pred_check
      _
    $region43: #{_gcn_apply.1} parent=1 // pred_check_branch
      %74 = sbr.rel (%p71) target = $region45
    $region44: #{_gcn_apply.1} parent=1 // pred_region
      %s89 = sand.u32 64, 7
      %p90 = scmp.eq.s32.totalorder %s89, 0
      // Predicated region
      $region57: #{_gcn_apply.1} parent=44 // pred_check
        %p91 = pneg %p90
      $region58: #{_gcn_apply.1} parent=44 // pred_check_branch
        %93 = sbr.rel (%p91) target = $region60
      $region59: #{_gcn_apply.1} parent=44 // pred_region
        loop: start=0, step=1, limit=1
        $region61: #{_gcn_apply.1} parent=59 // loop_pre_header
          _
        $region62: #{_gcn_apply.1} parent=59 // loop_header
          %s95 = sphi 0, %s99
          %p96 = scmp.ge.s32.totalorder %s95, 1
          %s100 = sphi %s0, %s0
          %s101 = sphi [#allocation2], [#allocation2]
        $region63: #{_gcn_apply.1} parent=59 // loop_header_branch
          %98 = sbr.rel (%p96) target = $region67
        $region64: #{_gcn_apply.1} parent=59 // loop_body
          %v102 = vld [vmem:[%s100] sm:$0xff]
          %103 = vst [vmem:[%s101] sm:$0xff] %v102
          %v104 = vld [vmem:[%s100 + $0x8] sm:$0xff]
          %105 = vst [vmem:[%s101 + $0x8] sm:$0xff] %v104
          %v106 = vld [vmem:[%s100 + $0x10] sm:$0xff]
          %107 = vst [vmem:[%s101 + $0x10] sm:$0xff] %v106
          %v108 = vld [vmem:[%s100 + $0x18] sm:$0xff]
          %109 = vst [vmem:[%s101 + $0x18] sm:$0xff] %v108
          %v110 = vld [vmem:[%s100 + $0x20] sm:$0xff]
          %111 = vst [vmem:[%s101 + $0x20] sm:$0xff] %v110
          %v112 = vld [vmem:[%s100 + $0x28] sm:$0xff]
          %113 = vst [vmem:[%s101 + $0x28] sm:$0xff] %v112
          %v114 = vld [vmem:[%s100 + $0x30] sm:$0xff]
          %115 = vst [vmem:[%s101 + $0x30] sm:$0xff] %v114
          %v116 = vld [vmem:[%s100 + $0x38] sm:$0xff]
          %117 = vst [vmem:[%s101 + $0x38] sm:$0xff] %v116
        $region65: #{_gcn_apply.1} parent=59 // loop_footer
          %s99 = sadd.s32 1, %s95
        $region66: #{_gcn_apply.1} parent=59 // loop_footer_branch
          %94 = sbr.rel target = $region62
        $region67: #{_gcn_apply.1} parent=59 // loop_exit
          _
      $region60: #{_gcn_apply.1} parent=44 // pred_fallthru
        _
      %p118 = pneg %p90
      // Predicated region
      $region68: #{_gcn_apply.1} parent=44 // pred_check
        _
      $region69: #{_gcn_apply.1} parent=44 // pred_check_branch
        %120 = sbr.rel (%p90) target = $region71
      $region70: #{_gcn_apply.1} parent=44 // pred_region
        %s121 = sand.u32 64, 7
      $region71: #{_gcn_apply.1} parent=44 // pred_fallthru
        _
    $region45: #{_gcn_apply.1} parent=1 // pred_fallthru
      _
    // Predicated region
    $region46: #{_gcn_apply.1} parent=1 // pred_check
      %p75 = pneg %p71
    $region47: #{_gcn_apply.1} parent=1 // pred_check_branch
      %77 = sbr.rel (%p75) target = $region49
    $region48: #{_gcn_apply.1} parent=1 // pred_region
      %s78 = sshllo.u32 0, 64
      loop: start=0, step=1, limit=1
      $region50: #{_gcn_apply.1} parent=48 // loop_pre_header
        _
      $region51: #{_gcn_apply.1} parent=48 // loop_header
        %s80 = sphi 0, %s84
        %p81 = scmp.ge.s32.totalorder %s80, 1
        %s85 = sphi %s0, %s0
        %s86 = sphi [#allocation2], [#allocation2]
      $region52: #{_gcn_apply.1} parent=48 // loop_header_branch
        %83 = sbr.rel (%p81) target = $region56
      $region53: #{_gcn_apply.1} parent=48 // loop_body
        %v87 = vld [vmem:[%s85] sm:%s78]
        %88 = vst [vmem:[%s86] sm:%s78] %v87
      $region54: #{_gcn_apply.1} parent=48 // loop_footer
        %s84 = sadd.s32 1, %s80
      $region55: #{_gcn_apply.1} parent=48 // loop_footer_branch
        %79 = sbr.rel target = $region51
      $region56: #{_gcn_apply.1} parent=48 // loop_exit
        _
    $region49: #{_gcn_apply.1} parent=1 // pred_fallthru
      _
    // Predicated region
    $region72: #{_gcn_apply.1} parent=1 // pred_check
      _
    $region73: #{_gcn_apply.1} parent=1 // pred_check_branch
      %124 = sbr.rel (0) target = $region75
    $region74: #{_gcn_apply.1} parent=1 // pred_region
      %125 = vsyncadd [#allocation4], 1024
    $region75: #{_gcn_apply.1} parent=1 // pred_fallthru
      _
    %v126 = vld [vmem:[%s1] sm:$0xf]
    %v127 = vld [vmem:[%s1 + $0x4] sm:$0xf]
    %v128 = vld [vmem:[%s1 + $0x8] sm:$0xf]
    %v129 = vld [vmem:[%s1 + $0xc] sm:$0xf]
    %v130 = vld [vmem:[%s1 + $0x10] sm:$0xf]
    %v131 = vld [vmem:[%s1 + $0x14] sm:$0xf]
    %v132 = vld [vmem:[%s1 + $0x18] sm:$0xf]
    %v133 = vld [vmem:[%s1 + $0x1c] sm:$0xf]
    %v134 = vld [vmem:[%s1 + $0x20] sm:$0xf]
    %v135 = vld [vmem:[%s1 + $0x24] sm:$0xf]
    %v136 = vld [vmem:[%s1 + $0x28] sm:$0xf]
    %v137 = vld [vmem:[%s1 + $0x2c] sm:$0xf]
    %v138 = vld [vmem:[%s1 + $0x30] sm:$0xf]
    %v139 = vld [vmem:[%s1 + $0x34] sm:$0xf]
    %v140 = vld [vmem:[%s1 + $0x38] sm:$0xf]
    %v141 = vld [vmem:[%s1 + $0x3c] sm:$0xf]
    %v142 = vld [vmem:[#allocation5] sm:$0xf]
    %v143 = vld [vmem:[#allocation5 + $0x4] sm:$0xf]
    %v144 = vld [vmem:[#allocation5 + $0x8] sm:$0xf]
    %v145 = vld [vmem:[#allocation5 + $0xc] sm:$0xf]
    %v146 = vld [vmem:[#allocation5 + $0x10] sm:$0xf]
    %v147 = vld [vmem:[#allocation5 + $0x14] sm:$0xf]
    %v148 = vld [vmem:[#allocation5 + $0x18] sm:$0xf]
    %v149 = vld [vmem:[#allocation5 + $0x1c] sm:$0xf]
    %v150 = vld [vmem:[#allocation5 + $0x20] sm:$0xf]
    %v151 = vld [vmem:[#allocation5 + $0x24] sm:$0xf]
    %v152 = vld [vmem:[#allocation5 + $0x28] sm:$0xf]
    %v153 = vld [vmem:[#allocation5 + $0x2c] sm:$0xf]
    %v154 = vld [vmem:[#allocation5 + $0x30] sm:$0xf]
    %v155 = vld [vmem:[#allocation5 + $0x34] sm:$0xf]
    %v156 = vld [vmem:[#allocation5 + $0x38] sm:$0xf]
    %v157 = vld [vmem:[#allocation5 + $0x3c] sm:$0xf]
    %v158 = vld [vmem:[%s3] sm:$0x1]
    %v175 = vunpack.c.l.b16 %v126
    %v176 = vunpack.c.l.b16 %v127
    %v177 = vunpack.c.l.b16 %v128
    %v178 = vunpack.c.l.b16 %v129
    %v179 = vunpack.c.l.b16 %v130
    %v180 = vunpack.c.l.b16 %v131
    %v181 = vunpack.c.l.b16 %v132
    %v182 = vunpack.c.l.b16 %v133
    %v183 = vunpack.c.l.b16 %v134
    %v184 = vunpack.c.l.b16 %v135
    %v185 = vunpack.c.l.b16 %v136
    %v186 = vunpack.c.l.b16 %v137
    %v187 = vunpack.c.l.b16 %v138
    %v188 = vunpack.c.l.b16 %v139
    %v189 = vunpack.c.l.b16 %v140
    %v190 = vunpack.c.l.b16 %v141
    %v191 = vpack.c.b16 %v176, %v175
    %v192 = vpack.c.b16 %v178, %v177
    %v193 = vpack.c.b16 %v180, %v179
    %v194 = vpack.c.b16 %v182, %v181
    %v195 = vpack.c.b16 %v184, %v183
    %v196 = vpack.c.b16 %v186, %v185
    %v197 = vpack.c.b16 %v188, %v187
    %v198 = vpack.c.b16 %v190, %v189
    %v223 = vunpack.c.l.b16 %v142
    %v224 = vunpack.c.l.b16 %v143
    %v225 = vunpack.c.l.b16 %v144
    %v226 = vunpack.c.l.b16 %v145
    %v227 = vunpack.c.l.b16 %v146
    %v228 = vunpack.c.l.b16 %v147
    %v229 = vunpack.c.l.b16 %v148
    %v230 = vunpack.c.l.b16 %v149
    %v231 = vunpack.c.l.b16 %v150
    %v232 = vunpack.c.l.b16 %v151
    %v233 = vunpack.c.l.b16 %v152
    %v234 = vunpack.c.l.b16 %v153
    %v235 = vunpack.c.l.b16 %v154
    %v236 = vunpack.c.l.b16 %v155
    %v237 = vunpack.c.l.b16 %v156
    %v238 = vunpack.c.l.b16 %v157
    %v239 = vpack.c.b16 %v224, %v223
    %v240 = vpack.c.b16 %v226, %v225
    %v241 = vpack.c.b16 %v228, %v227
    %v242 = vpack.c.b16 %v230, %v229
    %v243 = vpack.c.b16 %v232, %v231
    %v244 = vpack.c.b16 %v234, %v233
    %v245 = vpack.c.b16 %v236, %v235
    %v246 = vpack.c.b16 %v238, %v237
    %255 = vmatprep.subr.bf16.mxu0 0
    %256 = vmatpush1.bf16.msra.mxu0 %v239
    %257 = vmatprep.subr.bf16.mxu0 0
    %258 = vmatpush1.bf16.msra.mxu0 %v240
    %259 = vmatprep.subr.bf16.mxu0 0
    %260 = vmatpush1.bf16.msra.mxu0 %v241
    %261 = vmatprep.subr.bf16.mxu0 0
    %262 = vmatpush1.bf16.msra.mxu0 %v242
    %263 = vmatprep.subr.bf16.mxu0 0
    %264 = vmatpush1.bf16.msra.mxu0 %v243
    %265 = vmatprep.subr.bf16.mxu0 0
    %266 = vmatpush1.bf16.msra.mxu0 %v244
    %267 = vmatprep.subr.bf16.mxu0 0
    %268 = vmatpush1.bf16.msra.mxu0 %v245
    %269 = vmatprep.subr.bf16.mxu0 0
    %270 = vmatpush1.bf16.msra.mxu0 %v246
    %271 = vmatprep.subr.bf16.mxu0 0
    %272 = vmatpush1.bf16.msra.mxu0 0
    %273 = vmatprep.subr.bf16.mxu0 0
    %274 = vmatpush1.bf16.msra.mxu0 0
    %275 = vmatprep.subr.bf16.mxu0 0
    %276 = vmatpush1.bf16.msra.mxu0 0
    %277 = vmatprep.subr.bf16.mxu0 0
    %278 = vmatpush1.bf16.msra.mxu0 0
    %279 = vmatprep.subr.bf16.mxu0 0
    %280 = vmatpush1.bf16.msra.mxu0 0
    %281 = vmatprep.subr.bf16.mxu0 0
    %282 = vmatpush1.bf16.msra.mxu0 0
    %283 = vmatprep.subr.bf16.mxu0 0
    %284 = vmatpush1.bf16.msra.mxu0 0
    %285 = vmatprep.subr.bf16.mxu0 0
    %286 = vmatpush1.bf16.msra.mxu0 0
    %287 = vmatprep.mubr.bf16.mxu0 0
    %288 = vmatmul.mubr.bf16.gmra.mrb[0].mxu0 %v191
    %v289 = vpop.f32.mrb[0].mxu0
    %v290 = vadd.f32 0.0, %v289
    %v291 = vpop.f32.mrb[0].mxu0
    %v292 = vpop.f32.mrb[0].mxu0
    %v293 = vadd.f32 0.0, %v292
    %v294 = vpop.f32.mrb[0].mxu0
    %295 = vmatprep.mubr.bf16.mxu0 0
    %296 = vmatmul.mubr.bf16.gmra.mrb[0].mxu0 %v192
    %v297 = vpop.f32.mrb[0].mxu0
    %v298 = vadd.f32 0.0, %v297
    %v299 = vpop.f32.mrb[0].mxu0
    %v300 = vpop.f32.mrb[0].mxu0
    %v301 = vadd.f32 0.0, %v300
    %v302 = vpop.f32.mrb[0].mxu0
    %303 = vmatprep.mubr.bf16.mxu0 0
    %304 = vmatmul.mubr.bf16.gmra.mrb[0].mxu0 %v193
    %v305 = vpop.f32.mrb[0].mxu0
    %v306 = vadd.f32 0.0, %v305
    %v307 = vpop.f32.mrb[0].mxu0
    %v308 = vpop.f32.mrb[0].mxu0
    %v309 = vadd.f32 0.0, %v308
    %v310 = vpop.f32.mrb[0].mxu0
    %311 = vmatprep.mubr.bf16.mxu0 0
    %312 = vmatmul.mubr.bf16.gmra.mrb[0].mxu0 %v194
    %v313 = vpop.f32.mrb[0].mxu0
    %v314 = vadd.f32 0.0, %v313
    %v315 = vpop.f32.mrb[0].mxu0
    %v316 = vpop.f32.mrb[0].mxu0
    %v317 = vadd.f32 0.0, %v316
    %v318 = vpop.f32.mrb[0].mxu0
    %319 = vmatprep.mubr.bf16.mxu0 0
    %320 = vmatmul.mubr.bf16.gmra.mrb[0].mxu0 %v195
    %v321 = vpop.f32.mrb[0].mxu0
    %v322 = vadd.f32 0.0, %v321
    %v323 = vpop.f32.mrb[0].mxu0
    %v324 = vpop.f32.mrb[0].mxu0
    %v325 = vadd.f32 0.0, %v324
    %v326 = vpop.f32.mrb[0].mxu0
    %327 = vmatprep.mubr.bf16.mxu0 0
    %328 = vmatmul.mubr.bf16.gmra.mrb[0].mxu0 %v196
    %v329 = vpop.f32.mrb[0].mxu0
    %v330 = vadd.f32 0.0, %v329
    %v331 = vpop.f32.mrb[0].mxu0
    %v332 = vpop.f32.mrb[0].mxu0
    %v333 = vadd.f32 0.0, %v332
    %v334 = vpop.f32.mrb[0].mxu0
    %335 = vmatprep.mubr.bf16.mxu0 0
    %336 = vmatmul.mubr.bf16.gmra.mrb[0].mxu0 %v197
    %v337 = vpop.f32.mrb[0].mxu0
    %v338 = vadd.f32 0.0, %v337
    %v339 = vpop.f32.mrb[0].mxu0
    %v340 = vpop.f32.mrb[0].mxu0
    %v341 = vadd.f32 0.0, %v340
    %v342 = vpop.f32.mrb[0].mxu0
    %343 = vmatprep.mubr.bf16.mxu0 0
    %344 = vmatmul.mubr.bf16.gmra.mrb[0].mxu0 %v198
    %v345 = vpop.f32.mrb[0].mxu0
    %v346 = vadd.f32 0.0, %v345
    %v347 = vpop.f32.mrb[0].mxu0
    %v348 = vpop.f32.mrb[0].mxu0
    %v349 = vadd.f32 0.0, %v348
    %v350 = vpop.f32.mrb[0].mxu0
    %351 = vdwg.mxu0
    %v352 = vpack.c.bf16 %v293, %v290
    %v353 = vpack.c.bf16 %v301, %v298
    %v354 = vpack.c.bf16 %v309, %v306
    %v355 = vpack.c.bf16 %v317, %v314
    %v356 = vpack.c.bf16 %v325, %v322
    %v357 = vpack.c.bf16 %v333, %v330
    %v358 = vpack.c.bf16 %v341, %v338
    %v359 = vpack.c.bf16 %v349, %v346
    %s360 = smul.u32 4, 16
    %s361 = smul.u32 %s360, 1
    %s362 = sshll.u32 %s361, 4
    %363 = dma.done [#allocation4], %s362
    %v364 = vld [vmem:[#allocation2] sm:$0xff]
    %v365 = vld [vmem:[#allocation2 + $0x8] sm:$0xff]
    %v366 = vld [vmem:[#allocation2 + $0x10] sm:$0xff]
    %v367 = vld [vmem:[#allocation2 + $0x18] sm:$0xff]
    %v368 = vld [vmem:[#allocation2 + $0x20] sm:$0xff]
    %v369 = vld [vmem:[#allocation2 + $0x28] sm:$0xff]
    %v370 = vld [vmem:[#allocation2 + $0x30] sm:$0xff]
    %v371 = vld [vmem:[#allocation2 + $0x38] sm:$0xff]
    %v373 = vlaneseq
    %v374 = vshrl.u32 %v373, 7
    %v375 = vsub.s32 0, %v374
    %v376 = vrot.slane %v158, %v375
    %378 = vmatprep.subr.bf16.mxu0 0
    %379 = vmatpush1.bf16.msra.mxu0 %v352
    %380 = vmatprep.subr.bf16.mxu0 0
    %381 = vmatpush1.bf16.msra.mxu0 %v353
    %382 = vmatprep.subr.bf16.mxu0 0
    %383 = vmatpush1.bf16.msra.mxu0 %v354
    %384 = vmatprep.subr.bf16.mxu0 0
    %385 = vmatpush1.bf16.msra.mxu0 %v355
    %386 = vmatprep.subr.bf16.mxu0 0
    %387 = vmatpush1.bf16.msra.mxu0 %v356
    %388 = vmatprep.subr.bf16.mxu0 0
    %389 = vmatpush1.bf16.msra.mxu0 %v357
    %390 = vmatprep.subr.bf16.mxu0 0
    %391 = vmatpush1.bf16.msra.mxu0 %v358
    %392 = vmatprep.subr.bf16.mxu0 0
    %393 = vmatpush1.bf16.msra.mxu0 %v359
    %394 = vmatprep.subr.bf16.mxu0 0
    %395 = vmatpush1.bf16.msra.mxu0 0
    %396 = vmatprep.subr.bf16.mxu0 0
    %397 = vmatpush1.bf16.msra.mxu0 0
    %398 = vmatprep.subr.bf16.mxu0 0
    %399 = vmatpush1.bf16.msra.mxu0 0
    %400 = vmatprep.subr.bf16.mxu0 0
    %401 = vmatpush1.bf16.msra.mxu0 0
    %402 = vmatprep.subr.bf16.mxu0 0
    %403 = vmatpush1.bf16.msra.mxu0 0
    %404 = vmatprep.subr.bf16.mxu0 0
    %405 = vmatpush1.bf16.msra.mxu0 0
    %406 = vmatprep.subr.bf16.mxu0 0
    %407 = vmatpush1.bf16.msra.mxu0 0
    %408 = vmatprep.subr.bf16.mxu0 0
    %409 = vmatpush1.bf16.msra.mxu0 0
    %410 = vmatprep.mubr.bf16.mxu0 0
    %411 = vmatmul.mubr.bf16.gmra.mrb[0].mxu0 %v364
    %v412 = vpop.f32.mrb[0].mxu0
    %v413 = vadd.f32 %v376, %v412
    %v414 = vpop.f32.mrb[0].mxu0
    %v415 = vpop.f32.mrb[0].mxu0
    %v416 = vadd.f32 %v376, %v415
    %v417 = vpop.f32.mrb[0].mxu0
    %418 = vmatprep.mubr.bf16.mxu0 0
    %419 = vmatmul.mubr.bf16.gmra.mrb[0].mxu0 %v365
    %v420 = vpop.f32.mrb[0].mxu0
    %v421 = vadd.f32 %v376, %v420
    %v422 = vpop.f32.mrb[0].mxu0
    %v423 = vpop.f32.mrb[0].mxu0
    %v424 = vadd.f32 %v376, %v423
    %v425 = vpop.f32.mrb[0].mxu0
    %426 = vmatprep.mubr.bf16.mxu0 0
    %427 = vmatmul.mubr.bf16.gmra.mrb[0].mxu0 %v366
    %v428 = vpop.f32.mrb[0].mxu0
    %v429 = vadd.f32 %v376, %v428
    %v430 = vpop.f32.mrb[0].mxu0
    %v431 = vpop.f32.mrb[0].mxu0
    %v432 = vadd.f32 %v376, %v431
    %v433 = vpop.f32.mrb[0].mxu0
    %434 = vmatprep.mubr.bf16.mxu0 0
    %435 = vmatmul.mubr.bf16.gmra.mrb[0].mxu0 %v367
    %v436 = vpop.f32.mrb[0].mxu0
    %v437 = vadd.f32 %v376, %v436
    %v438 = vpop.f32.mrb[0].mxu0
    %v439 = vpop.f32.mrb[0].mxu0
    %v440 = vadd.f32 %v376, %v439
    %v441 = vpop.f32.mrb[0].mxu0
    %442 = vmatprep.mubr.bf16.mxu0 0
    %443 = vmatmul.mubr.bf16.gmra.mrb[0].mxu0 %v368
    %v444 = vpop.f32.mrb[0].mxu0
    %v445 = vadd.f32 %v376, %v444
    %v446 = vpop.f32.mrb[0].mxu0
    %v447 = vpop.f32.mrb[0].mxu0
    %v448 = vadd.f32 %v376, %v447
    %v449 = vpop.f32.mrb[0].mxu0
    %450 = vmatprep.mubr.bf16.mxu0 0
    %451 = vmatmul.mubr.bf16.gmra.mrb[0].mxu0 %v369
    %v452 = vpop.f32.mrb[0].mxu0
    %v453 = vadd.f32 %v376, %v452
    %v454 = vpop.f32.mrb[0].mxu0
    %v455 = vpop.f32.mrb[0].mxu0
    %v456 = vadd.f32 %v376, %v455
    %v457 = vpop.f32.mrb[0].mxu0
    %458 = vmatprep.mubr.bf16.mxu0 0
    %459 = vmatmul.mubr.bf16.gmra.mrb[0].mxu0 %v370
    %v460 = vpop.f32.mrb[0].mxu0
    %v461 = vadd.f32 %v376, %v460
    %v462 = vpop.f32.mrb[0].mxu0
    %v463 = vpop.f32.mrb[0].mxu0
    %v464 = vadd.f32 %v376, %v463
    %v465 = vpop.f32.mrb[0].mxu0
    %466 = vmatprep.mubr.bf16.mxu0 0
    %467 = vmatmul.mubr.bf16.gmra.mrb[0].mxu0 %v371
    %v468 = vpop.f32.mrb[0].mxu0
    %v469 = vadd.f32 %v376, %v468
    %v470 = vpop.f32.mrb[0].mxu0
    %v471 = vpop.f32.mrb[0].mxu0
    %v472 = vadd.f32 %v376, %v471
    %v473 = vpop.f32.mrb[0].mxu0
    %474 = vdwg.mxu0
    %v475 = vmax.f32 %v413, 0.0
    %v476 = vmax.f32 %v416, 0.0
    %v477 = vmax.f32 %v421, 0.0
    %v478 = vmax.f32 %v424, 0.0
    %v479 = vmax.f32 %v429, 0.0
    %v480 = vmax.f32 %v432, 0.0
    %v481 = vmax.f32 %v437, 0.0
    %v482 = vmax.f32 %v440, 0.0
    %v483 = vmax.f32 %v445, 0.0
    %v484 = vmax.f32 %v448, 0.0
    %v485 = vmax.f32 %v453, 0.0
    %v486 = vmax.f32 %v456, 0.0
    %v487 = vmax.f32 %v461, 0.0
    %v488 = vmax.f32 %v464, 0.0
    %v489 = vmax.f32 %v469, 0.0
    %v490 = vmax.f32 %v472, 0.0
    %v491 = vpack.c.bf16 %v476, %v475
    %v492 = vpack.c.bf16 %v478, %v477
    %v493 = vpack.c.bf16 %v480, %v479
    %v494 = vpack.c.bf16 %v482, %v481
    %v495 = vpack.c.bf16 %v484, %v483
    %v496 = vpack.c.bf16 %v486, %v485
    %v497 = vpack.c.bf16 %v488, %v487
    %v498 = vpack.c.bf16 %v490, %v489
    %499 = vst [vmem:[#allocation3] sm:$0xff] %v491
    %500 = vst [vmem:[#allocation3 + $0x8] sm:$0xff] %v492
    %501 = vst [vmem:[#allocation3 + $0x10] sm:$0xff] %v493
    %502 = vst [vmem:[#allocation3 + $0x18] sm:$0xff] %v494
    %503 = vst [vmem:[#allocation3 + $0x20] sm:$0xff] %v495
    %504 = vst [vmem:[#allocation3 + $0x28] sm:$0xff] %v496
    %505 = vst [vmem:[#allocation3 + $0x30] sm:$0xff] %v497
    %506 = vst [vmem:[#allocation3 + $0x38] sm:$0xff] %v498
    %v507 = vld [vmem:[#allocation8] sm:$0xf]
    %v508 = vld [vmem:[#allocation8 + $0x4] sm:$0xf]
    %v509 = vld [vmem:[#allocation8 + $0x8] sm:$0xf]
    %v510 = vld [vmem:[#allocation8 + $0xc] sm:$0xf]
    %v511 = vld [vmem:[#allocation8 + $0x10] sm:$0xf]
    %v512 = vld [vmem:[#allocation8 + $0x14] sm:$0xf]
    %v513 = vld [vmem:[#allocation8 + $0x18] sm:$0xf]
    %v514 = vld [vmem:[#allocation8 + $0x1c] sm:$0xf]
    %v515 = vld [vmem:[#allocation8 + $0x20] sm:$0xf]
    %v516 = vld [vmem:[#allocation8 + $0x24] sm:$0xf]
    %v517 = vld [vmem:[#allocation8 + $0x28] sm:$0xf]
    %v518 = vld [vmem:[#allocation8 + $0x2c] sm:$0xf]
    %v519 = vld [vmem:[#allocation8 + $0x30] sm:$0xf]
    %v520 = vld [vmem:[#allocation8 + $0x34] sm:$0xf]
    %v521 = vld [vmem:[#allocation8 + $0x38] sm:$0xf]
    %v522 = vld [vmem:[#allocation8 + $0x3c] sm:$0xf]
    %v523 = vld [vmem:[%s5] sm:$0x1]
    %v524 = vld [vmem:[#allocation3] sm:$0xff]
    %v525 = vld [vmem:[#allocation3 + $0x8] sm:$0xff]
    %v526 = vld [vmem:[#allocation3 + $0x10] sm:$0xff]
    %v527 = vld [vmem:[#allocation3 + $0x18] sm:$0xff]
    %v528 = vld [vmem:[#allocation3 + $0x20] sm:$0xff]
    %v529 = vld [vmem:[#allocation3 + $0x28] sm:$0xff]
    %v530 = vld [vmem:[#allocation3 + $0x30] sm:$0xff]
    %v531 = vld [vmem:[#allocation3 + $0x38] sm:$0xff]
    %v548 = vunpack.c.l.b16 %v507
    %v549 = vunpack.c.l.b16 %v508
    %v550 = vunpack.c.l.b16 %v509
    %v551 = vunpack.c.l.b16 %v510
    %v552 = vunpack.c.l.b16 %v511
    %v553 = vunpack.c.l.b16 %v512
    %v554 = vunpack.c.l.b16 %v513
    %v555 = vunpack.c.l.b16 %v514
    %v556 = vunpack.c.l.b16 %v515
    %v557 = vunpack.c.l.b16 %v516
    %v558 = vunpack.c.l.b16 %v517
    %v559 = vunpack.c.l.b16 %v518
    %v560 = vunpack.c.l.b16 %v519
    %v561 = vunpack.c.l.b16 %v520
    %v562 = vunpack.c.l.b16 %v521
    %v563 = vunpack.c.l.b16 %v522
    %v564 = vpack.c.b16 %v549, %v548
    %v565 = vpack.c.b16 %v551, %v550
    %v566 = vpack.c.b16 %v553, %v552
    %v567 = vpack.c.b16 %v555, %v554
    %v568 = vpack.c.b16 %v557, %v556
    %v569 = vpack.c.b16 %v559, %v558
    %v570 = vpack.c.b16 %v561, %v560
    %v571 = vpack.c.b16 %v563, %v562
    %580 = vmatprep.subr.bf16.mxu0 0
    %581 = vmatpush1.bf16.msra.mxu0 %v564
    %582 = vmatprep.subr.bf16.mxu0 0
    %583 = vmatpush1.bf16.msra.mxu0 %v565
    %584 = vmatprep.subr.bf16.mxu0 0
    %585 = vmatpush1.bf16.msra.mxu0 %v566
    %586 = vmatprep.subr.bf16.mxu0 0
    %587 = vmatpush1.bf16.msra.mxu0 %v567
    %588 = vmatprep.subr.bf16.mxu0 0
    %589 = vmatpush1.bf16.msra.mxu0 %v568
    %590 = vmatprep.subr.bf16.mxu0 0
    %591 = vmatpush1.bf16.msra.mxu0 %v569
    %592 = vmatprep.subr.bf16.mxu0 0
    %593 = vmatpush1.bf16.msra.mxu0 %v570
    %594 = vmatprep.subr.bf16.mxu0 0
    %595 = vmatpush1.bf16.msra.mxu0 %v571
    %596 = vmatprep.subr.bf16.mxu0 0
    %597 = vmatpush1.bf16.msra.mxu0 0
    %598 = vmatprep.subr.bf16.mxu0 0
    %599 = vmatpush1.bf16.msra.mxu0 0
    %600 = vmatprep.subr.bf16.mxu0 0
    %601 = vmatpush1.bf16.msra.mxu0 0
    %602 = vmatprep.subr.bf16.mxu0 0
    %603 = vmatpush1.bf16.msra.mxu0 0
    %604 = vmatprep.subr.bf16.mxu0 0
    %605 = vmatpush1.bf16.msra.mxu0 0
    %606 = vmatprep.subr.bf16.mxu0 0
    %607 = vmatpush1.bf16.msra.mxu0 0
    %608 = vmatprep.subr.bf16.mxu0 0
    %609 = vmatpush1.bf16.msra.mxu0 0
    %610 = vmatprep.subr.bf16.mxu0 0
    %611 = vmatpush1.bf16.msra.mxu0 0
    %612 = vmatprep.mubr.bf16.mxu0 0
    %613 = vmatmul.mubr.bf16.gmra.mrb[0].mxu0 %v524
    %v614 = vpop.f32.mrb[0].mxu0
    %v615 = vadd.f32 0.0, %v614
    %v616 = vpop.f32.mrb[0].mxu0
    %v617 = vpop.f32.mrb[0].mxu0
    %v618 = vadd.f32 0.0, %v617
    %v619 = vpop.f32.mrb[0].mxu0
    %620 = vmatprep.mubr.bf16.mxu0 0
    %621 = vmatmul.mubr.bf16.gmra.mrb[0].mxu0 %v525
    %v622 = vpop.f32.mrb[0].mxu0
    %v623 = vadd.f32 0.0, %v622
    %v624 = vpop.f32.mrb[0].mxu0
    %v625 = vpop.f32.mrb[0].mxu0
    %v626 = vadd.f32 0.0, %v625
    %v627 = vpop.f32.mrb[0].mxu0
    %628 = vmatprep.mubr.bf16.mxu0 0
    %629 = vmatmul.mubr.bf16.gmra.mrb[0].mxu0 %v526
    %v630 = vpop.f32.mrb[0].mxu0
    %v631 = vadd.f32 0.0, %v630
    %v632 = vpop.f32.mrb[0].mxu0
    %v633 = vpop.f32.mrb[0].mxu0
    %v634 = vadd.f32 0.0, %v633
    %v635 = vpop.f32.mrb[0].mxu0
    %636 = vmatprep.mubr.bf16.mxu0 0
    %637 = vmatmul.mubr.bf16.gmra.mrb[0].mxu0 %v527
    %v638 = vpop.f32.mrb[0].mxu0
    %v639 = vadd.f32 0.0, %v638
    %v640 = vpop.f32.mrb[0].mxu0
    %v641 = vpop.f32.mrb[0].mxu0
    %v642 = vadd.f32 0.0, %v641
    %v643 = vpop.f32.mrb[0].mxu0
    %644 = vmatprep.mubr.bf16.mxu0 0
    %645 = vmatmul.mubr.bf16.gmra.mrb[0].mxu0 %v528
    %v646 = vpop.f32.mrb[0].mxu0
    %v647 = vadd.f32 0.0, %v646
    %v648 = vpop.f32.mrb[0].mxu0
    %v649 = vpop.f32.mrb[0].mxu0
    %v650 = vadd.f32 0.0, %v649
    %v651 = vpop.f32.mrb[0].mxu0
    %652 = vmatprep.mubr.bf16.mxu0 0
    %653 = vmatmul.mubr.bf16.gmra.mrb[0].mxu0 %v529
    %v654 = vpop.f32.mrb[0].mxu0
    %v655 = vadd.f32 0.0, %v654
    %v656 = vpop.f32.mrb[0].mxu0
    %v657 = vpop.f32.mrb[0].mxu0
    %v658 = vadd.f32 0.0, %v657
    %v659 = vpop.f32.mrb[0].mxu0
    %660 = vmatprep.mubr.bf16.mxu0 0
    %661 = vmatmul.mubr.bf16.gmra.mrb[0].mxu0 %v530
    %v662 = vpop.f32.mrb[0].mxu0
    %v663 = vadd.f32 0.0, %v662
    %v664 = vpop.f32.mrb[0].mxu0
    %v665 = vpop.f32.mrb[0].mxu0
    %v666 = vadd.f32 0.0, %v665
    %v667 = vpop.f32.mrb[0].mxu0
    %668 = vmatprep.mubr.bf16.mxu0 0
    %669 = vmatmul.mubr.bf16.gmra.mrb[0].mxu0 %v531
    %v670 = vpop.f32.mrb[0].mxu0
    %v671 = vadd.f32 0.0, %v670
    %v672 = vpop.f32.mrb[0].mxu0
    %v673 = vpop.f32.mrb[0].mxu0
    %v674 = vadd.f32 0.0, %v673
    %v675 = vpop.f32.mrb[0].mxu0
    %676 = vdwg.mxu0
    %v677 = vpack.c.bf16 %v618, %v615
    %v678 = vpack.c.bf16 %v626, %v623
    %v679 = vpack.c.bf16 %v634, %v631
    %v680 = vpack.c.bf16 %v642, %v639
    %v681 = vpack.c.bf16 %v650, %v647
    %v682 = vpack.c.bf16 %v658, %v655
    %v683 = vpack.c.bf16 %v666, %v663
    %v684 = vpack.c.bf16 %v674, %v671
    %v685 = vld [vmem:[#allocation2] sm:$0xff]
    %v686 = vld [vmem:[#allocation2 + $0x8] sm:$0xff]
    %v687 = vld [vmem:[#allocation2 + $0x10] sm:$0xff]
    %v688 = vld [vmem:[#allocation2 + $0x18] sm:$0xff]
    %v689 = vld [vmem:[#allocation2 + $0x20] sm:$0xff]
    %v690 = vld [vmem:[#allocation2 + $0x28] sm:$0xff]
    %v691 = vld [vmem:[#allocation2 + $0x30] sm:$0xff]
    %v692 = vld [vmem:[#allocation2 + $0x38] sm:$0xff]
    %v694 = vlaneseq
    %v695 = vshrl.u32 %v694, 7
    %v696 = vsub.s32 0, %v695
    %v697 = vrot.slane %v523, %v696
    %699 = vmatprep.subr.bf16.mxu0 0
    %700 = vmatpush1.bf16.msra.mxu0 %v677
    %701 = vmatprep.subr.bf16.mxu0 0
    %702 = vmatpush1.bf16.msra.mxu0 %v678
    %703 = vmatprep.subr.bf16.mxu0 0
    %704 = vmatpush1.bf16.msra.mxu0 %v679
    %705 = vmatprep.subr.bf16.mxu0 0
    %706 = vmatpush1.bf16.msra.mxu0 %v680
    %707 = vmatprep.subr.bf16.mxu0 0
    %708 = vmatpush1.bf16.msra.mxu0 %v681
    %709 = vmatprep.subr.bf16.mxu0 0
    %710 = vmatpush1.bf16.msra.mxu0 %v682
    %711 = vmatprep.subr.bf16.mxu0 0
    %712 = vmatpush1.bf16.msra.mxu0 %v683
    %713 = vmatprep.subr.bf16.mxu0 0
    %714 = vmatpush1.bf16.msra.mxu0 %v684
    %715 = vmatprep.subr.bf16.mxu0 0
    %716 = vmatpush1.bf16.msra.mxu0 0
    %717 = vmatprep.subr.bf16.mxu0 0
    %718 = vmatpush1.bf16.msra.mxu0 0
    %719 = vmatprep.subr.bf16.mxu0 0
    %720 = vmatpush1.bf16.msra.mxu0 0
    %721 = vmatprep.subr.bf16.mxu0 0
    %722 = vmatpush1.bf16.msra.mxu0 0
    %723 = vmatprep.subr.bf16.mxu0 0
    %724 = vmatpush1.bf16.msra.mxu0 0
    %725 = vmatprep.subr.bf16.mxu0 0
    %726 = vmatpush1.bf16.msra.mxu0 0
    %727 = vmatprep.subr.bf16.mxu0 0
    %728 = vmatpush1.bf16.msra.mxu0 0
    %729 = vmatprep.subr.bf16.mxu0 0
    %730 = vmatpush1.bf16.msra.mxu0 0
    %731 = vmatprep.mubr.bf16.mxu0 0
    %732 = vmatmul.mubr.bf16.gmra.mrb[0].mxu0 %v685
    %v733 = vpop.f32.mrb[0].mxu0
    %v734 = vadd.f32 %v697, %v733
    %v735 = vpop.f32.mrb[0].mxu0
    %v736 = vpop.f32.mrb[0].mxu0
    %v737 = vadd.f32 %v697, %v736
    %v738 = vpop.f32.mrb[0].mxu0
    %739 = vmatprep.mubr.bf16.mxu0 0
    %740 = vmatmul.mubr.bf16.gmra.mrb[0].mxu0 %v686
    %v741 = vpop.f32.mrb[0].mxu0
    %v742 = vadd.f32 %v697, %v741
    %v743 = vpop.f32.mrb[0].mxu0
    %v744 = vpop.f32.mrb[0].mxu0
    %v745 = vadd.f32 %v697, %v744
    %v746 = vpop.f32.mrb[0].mxu0
    %747 = vmatprep.mubr.bf16.mxu0 0
    %748 = vmatmul.mubr.bf16.gmra.mrb[0].mxu0 %v687
    %v749 = vpop.f32.mrb[0].mxu0
    %v750 = vadd.f32 %v697, %v749
    %v751 = vpop.f32.mrb[0].mxu0
    %v752 = vpop.f32.mrb[0].mxu0
    %v753 = vadd.f32 %v697, %v752
    %v754 = vpop.f32.mrb[0].mxu0
    %755 = vmatprep.mubr.bf16.mxu0 0
    %756 = vmatmul.mubr.bf16.gmra.mrb[0].mxu0 %v688
    %v757 = vpop.f32.mrb[0].mxu0
    %v758 = vadd.f32 %v697, %v757
    %v759 = vpop.f32.mrb[0].mxu0
    %v760 = vpop.f32.mrb[0].mxu0
    %v761 = vadd.f32 %v697, %v760
    %v762 = vpop.f32.mrb[0].mxu0
    %763 = vmatprep.mubr.bf16.mxu0 0
    %764 = vmatmul.mubr.bf16.gmra.mrb[0].mxu0 %v689
    %v765 = vpop.f32.mrb[0].mxu0
    %v766 = vadd.f32 %v697, %v765
    %v767 = vpop.f32.mrb[0].mxu0
    %v768 = vpop.f32.mrb[0].mxu0
    %v769 = vadd.f32 %v697, %v768
    %v770 = vpop.f32.mrb[0].mxu0
    %771 = vmatprep.mubr.bf16.mxu0 0
    %772 = vmatmul.mubr.bf16.gmra.mrb[0].mxu0 %v690
    %v773 = vpop.f32.mrb[0].mxu0
    %v774 = vadd.f32 %v697, %v773
    %v775 = vpop.f32.mrb[0].mxu0
    %v776 = vpop.f32.mrb[0].mxu0
    %v777 = vadd.f32 %v697, %v776
    %v778 = vpop.f32.mrb[0].mxu0
    %779 = vmatprep.mubr.bf16.mxu0 0
    %780 = vmatmul.mubr.bf16.gmra.mrb[0].mxu0 %v691
    %v781 = vpop.f32.mrb[0].mxu0
    %v782 = vadd.f32 %v697, %v781
    %v783 = vpop.f32.mrb[0].mxu0
    %v784 = vpop.f32.mrb[0].mxu0
    %v785 = vadd.f32 %v697, %v784
    %v786 = vpop.f32.mrb[0].mxu0
    %787 = vmatprep.mubr.bf16.mxu0 0
    %788 = vmatmul.mubr.bf16.gmra.mrb[0].mxu0 %v692
    %v789 = vpop.f32.mrb[0].mxu0
    %v790 = vadd.f32 %v697, %v789
    %v791 = vpop.f32.mrb[0].mxu0
    %v792 = vpop.f32.mrb[0].mxu0
    %v793 = vadd.f32 %v697, %v792
    %v794 = vpop.f32.mrb[0].mxu0
    %795 = vdwg.mxu0
    %v796 = vmax.f32 %v734, 0.0
    %v797 = vmax.f32 %v737, 0.0
    %v798 = vmax.f32 %v742, 0.0
    %v799 = vmax.f32 %v745, 0.0
    %v800 = vmax.f32 %v750, 0.0
    %v801 = vmax.f32 %v753, 0.0
    %v802 = vmax.f32 %v758, 0.0
    %v803 = vmax.f32 %v761, 0.0
    %v804 = vmax.f32 %v766, 0.0
    %v805 = vmax.f32 %v769, 0.0
    %v806 = vmax.f32 %v774, 0.0
    %v807 = vmax.f32 %v777, 0.0
    %v808 = vmax.f32 %v782, 0.0
    %v809 = vmax.f32 %v785, 0.0
    %v810 = vmax.f32 %v790, 0.0
    %v811 = vmax.f32 %v793, 0.0
    %v812 = vpack.c.bf16 %v797, %v796
    %v813 = vpack.c.bf16 %v799, %v798
    %v814 = vpack.c.bf16 %v801, %v800
    %v815 = vpack.c.bf16 %v803, %v802
    %v816 = vpack.c.bf16 %v805, %v804
    %v817 = vpack.c.bf16 %v807, %v806
    %v818 = vpack.c.bf16 %v809, %v808
    %v819 = vpack.c.bf16 %v811, %v810
    %820 = vst [vmem:[#allocation3] sm:$0xff] %v812
    %821 = vst [vmem:[#allocation3 + $0x8] sm:$0xff] %v813
    %822 = vst [vmem:[#allocation3 + $0x10] sm:$0xff] %v814
    %823 = vst [vmem:[#allocation3 + $0x18] sm:$0xff] %v815
    %824 = vst [vmem:[#allocation3 + $0x20] sm:$0xff] %v816
    %825 = vst [vmem:[#allocation3 + $0x28] sm:$0xff] %v817
    %826 = vst [vmem:[#allocation3 + $0x30] sm:$0xff] %v818
    %827 = vst [vmem:[#allocation3 + $0x38] sm:$0xff] %v819
    %v828 = vld [vmem:[#allocation10] sm:$0xf]
    %v829 = vld [vmem:[#allocation10 + $0x4] sm:$0xf]
    %v830 = vld [vmem:[#allocation10 + $0x8] sm:$0xf]
    %v831 = vld [vmem:[#allocation10 + $0xc] sm:$0xf]
    %v832 = vld [vmem:[#allocation10 + $0x10] sm:$0xf]
    %v833 = vld [vmem:[#allocation10 + $0x14] sm:$0xf]
    %v834 = vld [vmem:[#allocation10 + $0x18] sm:$0xf]
    %v835 = vld [vmem:[#allocation10 + $0x1c] sm:$0xf]
    %v836 = vld [vmem:[#allocation10 + $0x20] sm:$0xf]
    %v837 = vld [vmem:[#allocation10 + $0x24] sm:$0xf]
    %v838 = vld [vmem:[#allocation10 + $0x28] sm:$0xf]
    %v839 = vld [vmem:[#allocation10 + $0x2c] sm:$0xf]
    %v840 = vld [vmem:[#allocation10 + $0x30] sm:$0xf]
    %v841 = vld [vmem:[#allocation10 + $0x34] sm:$0xf]
    %v842 = vld [vmem:[#allocation10 + $0x38] sm:$0xf]
    %v843 = vld [vmem:[#allocation10 + $0x3c] sm:$0xf]
    %v844 = vld [vmem:[%s7] sm:$0x1]
    %v845 = vld [vmem:[#allocation3] sm:$0xff]
    %v846 = vld [vmem:[#allocation3 + $0x8] sm:$0xff]
    %v847 = vld [vmem:[#allocation3 + $0x10] sm:$0xff]
    %v848 = vld [vmem:[#allocation3 + $0x18] sm:$0xff]
    %v849 = vld [vmem:[#allocation3 + $0x20] sm:$0xff]
    %v850 = vld [vmem:[#allocation3 + $0x28] sm:$0xff]
    %v851 = vld [vmem:[#allocation3 + $0x30] sm:$0xff]
    %v852 = vld [vmem:[#allocation3 + $0x38] sm:$0xff]
    %v869 = vunpack.c.l.b16 %v828
    %v870 = vunpack.c.l.b16 %v829
    %v871 = vunpack.c.l.b16 %v830
    %v872 = vunpack.c.l.b16 %v831
    %v873 = vunpack.c.l.b16 %v832
    %v874 = vunpack.c.l.b16 %v833
    %v875 = vunpack.c.l.b16 %v834
    %v876 = vunpack.c.l.b16 %v835
    %v877 = vunpack.c.l.b16 %v836
    %v878 = vunpack.c.l.b16 %v837
    %v879 = vunpack.c.l.b16 %v838
    %v880 = vunpack.c.l.b16 %v839
    %v881 = vunpack.c.l.b16 %v840
    %v882 = vunpack.c.l.b16 %v841
    %v883 = vunpack.c.l.b16 %v842
    %v884 = vunpack.c.l.b16 %v843
    %v885 = vpack.c.b16 %v870, %v869
    %v886 = vpack.c.b16 %v872, %v871
    %v887 = vpack.c.b16 %v874, %v873
    %v888 = vpack.c.b16 %v876, %v875
    %v889 = vpack.c.b16 %v878, %v877
    %v890 = vpack.c.b16 %v880, %v879
    %v891 = vpack.c.b16 %v882, %v881
    %v892 = vpack.c.b16 %v884, %v883
    %901 = vmatprep.subr.bf16.mxu0 0
    %902 = vmatpush1.bf16.msra.mxu0 %v885
    %903 = vmatprep.subr.bf16.mxu0 0
    %904 = vmatpush1.bf16.msra.mxu0 %v886
    %905 = vmatprep.subr.bf16.mxu0 0
    %906 = vmatpush1.bf16.msra.mxu0 %v887
    %907 = vmatprep.subr.bf16.mxu0 0
    %908 = vmatpush1.bf16.msra.mxu0 %v888
    %909 = vmatprep.subr.bf16.mxu0 0
    %910 = vmatpush1.bf16.msra.mxu0 %v889
    %911 = vmatprep.subr.bf16.mxu0 0
    %912 = vmatpush1.bf16.msra.mxu0 %v890
    %913 = vmatprep.subr.bf16.mxu0 0
    %914 = vmatpush1.bf16.msra.mxu0 %v891
    %915 = vmatprep.subr.bf16.mxu0 0
    %916 = vmatpush1.bf16.msra.mxu0 %v892
    %917 = vmatprep.subr.bf16.mxu0 0
    %918 = vmatpush1.bf16.msra.mxu0 0
    %919 = vmatprep.subr.bf16.mxu0 0
    %920 = vmatpush1.bf16.msra.mxu0 0
    %921 = vmatprep.subr.bf16.mxu0 0
    %922 = vmatpush1.bf16.msra.mxu0 0
    %923 = vmatprep.subr.bf16.mxu0 0
    %924 = vmatpush1.bf16.msra.mxu0 0
    %925 = vmatprep.subr.bf16.mxu0 0
    %926 = vmatpush1.bf16.msra.mxu0 0
    %927 = vmatprep.subr.bf16.mxu0 0
    %928 = vmatpush1.bf16.msra.mxu0 0
    %929 = vmatprep.subr.bf16.mxu0 0
    %930 = vmatpush1.bf16.msra.mxu0 0
    %931 = vmatprep.subr.bf16.mxu0 0
    %932 = vmatpush1.bf16.msra.mxu0 0
    %933 = vmatprep.mubr.bf16.mxu0 0
    %934 = vmatmul.mubr.bf16.gmra.mrb[0].mxu0 %v845
    %v935 = vpop.f32.mrb[0].mxu0
    %v936 = vadd.f32 0.0, %v935
    %v937 = vpop.f32.mrb[0].mxu0
    %v938 = vpop.f32.mrb[0].mxu0
    %v939 = vadd.f32 0.0, %v938
    %v940 = vpop.f32.mrb[0].mxu0
    %941 = vmatprep.mubr.bf16.mxu0 0
    %942 = vmatmul.mubr.bf16.gmra.mrb[0].mxu0 %v846
    %v943 = vpop.f32.mrb[0].mxu0
    %v944 = vadd.f32 0.0, %v943
    %v945 = vpop.f32.mrb[0].mxu0
    %v946 = vpop.f32.mrb[0].mxu0
    %v947 = vadd.f32 0.0, %v946
    %v948 = vpop.f32.mrb[0].mxu0
    %949 = vmatprep.mubr.bf16.mxu0 0
    %950 = vmatmul.mubr.bf16.gmra.mrb[0].mxu0 %v847
    %v951 = vpop.f32.mrb[0].mxu0
    %v952 = vadd.f32 0.0, %v951
    %v953 = vpop.f32.mrb[0].mxu0
    %v954 = vpop.f32.mrb[0].mxu0
    %v955 = vadd.f32 0.0, %v954
    %v956 = vpop.f32.mrb[0].mxu0
    %957 = vmatprep.mubr.bf16.mxu0 0
    %958 = vmatmul.mubr.bf16.gmra.mrb[0].mxu0 %v848
    %v959 = vpop.f32.mrb[0].mxu0
    %v960 = vadd.f32 0.0, %v959
    %v961 = vpop.f32.mrb[0].mxu0
    %v962 = vpop.f32.mrb[0].mxu0
    %v963 = vadd.f32 0.0, %v962
    %v964 = vpop.f32.mrb[0].mxu0
    %965 = vmatprep.mubr.bf16.mxu0 0
    %966 = vmatmul.mubr.bf16.gmra.mrb[0].mxu0 %v849
    %v967 = vpop.f32.mrb[0].mxu0
    %v968 = vadd.f32 0.0, %v967
    %v969 = vpop.f32.mrb[0].mxu0
    %v970 = vpop.f32.mrb[0].mxu0
    %v971 = vadd.f32 0.0, %v970
    %v972 = vpop.f32.mrb[0].mxu0
    %973 = vmatprep.mubr.bf16.mxu0 0
    %974 = vmatmul.mubr.bf16.gmra.mrb[0].mxu0 %v850
    %v975 = vpop.f32.mrb[0].mxu0
    %v976 = vadd.f32 0.0, %v975
    %v977 = vpop.f32.mrb[0].mxu0
    %v978 = vpop.f32.mrb[0].mxu0
    %v979 = vadd.f32 0.0, %v978
    %v980 = vpop.f32.mrb[0].mxu0
    %981 = vmatprep.mubr.bf16.mxu0 0
    %982 = vmatmul.mubr.bf16.gmra.mrb[0].mxu0 %v851
    %v983 = vpop.f32.mrb[0].mxu0
    %v984 = vadd.f32 0.0, %v983
    %v985 = vpop.f32.mrb[0].mxu0
    %v986 = vpop.f32.mrb[0].mxu0
    %v987 = vadd.f32 0.0, %v986
    %v988 = vpop.f32.mrb[0].mxu0
    %989 = vmatprep.mubr.bf16.mxu0 0
    %990 = vmatmul.mubr.bf16.gmra.mrb[0].mxu0 %v852
    %v991 = vpop.f32.mrb[0].mxu0
    %v992 = vadd.f32 0.0, %v991
    %v993 = vpop.f32.mrb[0].mxu0
    %v994 = vpop.f32.mrb[0].mxu0
    %v995 = vadd.f32 0.0, %v994
    %v996 = vpop.f32.mrb[0].mxu0
    %997 = vdwg.mxu0
    %v998 = vpack.c.bf16 %v939, %v936
    %v999 = vpack.c.bf16 %v947, %v944
    %v1000 = vpack.c.bf16 %v955, %v952
    %v1001 = vpack.c.bf16 %v963, %v960
    %v1002 = vpack.c.bf16 %v971, %v968
    %v1003 = vpack.c.bf16 %v979, %v976
    %v1004 = vpack.c.bf16 %v987, %v984
    %v1005 = vpack.c.bf16 %v995, %v992
    %v1006 = vld [vmem:[#allocation2] sm:$0xff]
    %v1007 = vld [vmem:[#allocation2 + $0x8] sm:$0xff]
    %v1008 = vld [vmem:[#allocation2 + $0x10] sm:$0xff]
    %v1009 = vld [vmem:[#allocation2 + $0x18] sm:$0xff]
    %v1010 = vld [vmem:[#allocation2 + $0x20] sm:$0xff]
    %v1011 = vld [vmem:[#allocation2 + $0x28] sm:$0xff]
    %v1012 = vld [vmem:[#allocation2 + $0x30] sm:$0xff]
    %v1013 = vld [vmem:[#allocation2 + $0x38] sm:$0xff]
    %v1015 = vlaneseq
    %v1016 = vshrl.u32 %v1015, 7
    %v1017 = vsub.s32 0, %v1016
    %v1018 = vrot.slane %v844, %v1017
    %1020 = vmatprep.subr.bf16.mxu0 0
    %1021 = vmatpush1.bf16.msra.mxu0 %v998
    %1022 = vmatprep.subr.bf16.mxu0 0
    %1023 = vmatpush1.bf16.msra.mxu0 %v999
    %1024 = vmatprep.subr.bf16.mxu0 0
    %1025 = vmatpush1.bf16.msra.mxu0 %v1000
    %1026 = vmatprep.subr.bf16.mxu0 0
    %1027 = vmatpush1.bf16.msra.mxu0 %v1001
    %1028 = vmatprep.subr.bf16.mxu0 0
    %1029 = vmatpush1.bf16.msra.mxu0 %v1002
    %1030 = vmatprep.subr.bf16.mxu0 0
    %1031 = vmatpush1.bf16.msra.mxu0 %v1003
    %1032 = vmatprep.subr.bf16.mxu0 0
    %1033 = vmatpush1.bf16.msra.mxu0 %v1004
    %1034 = vmatprep.subr.bf16.mxu0 0
    %1035 = vmatpush1.bf16.msra.mxu0 %v1005
    %1036 = vmatprep.subr.bf16.mxu0 0
    %1037 = vmatpush1.bf16.msra.mxu0 0
    %1038 = vmatprep.subr.bf16.mxu0 0
    %1039 = vmatpush1.bf16.msra.mxu0 0
    %1040 = vmatprep.subr.bf16.mxu0 0
    %1041 = vmatpush1.bf16.msra.mxu0 0
    %1042 = vmatprep.subr.bf16.mxu0 0
    %1043 = vmatpush1.bf16.msra.mxu0 0
    %1044 = vmatprep.subr.bf16.mxu0 0
    %1045 = vmatpush1.bf16.msra.mxu0 0
    %1046 = vmatprep.subr.bf16.mxu0 0
    %1047 = vmatpush1.bf16.msra.mxu0 0
    %1048 = vmatprep.subr.bf16.mxu0 0
    %1049 = vmatpush1.bf16.msra.mxu0 0
    %1050 = vmatprep.subr.bf16.mxu0 0
    %1051 = vmatpush1.bf16.msra.mxu0 0
    %1052 = vmatprep.mubr.bf16.mxu0 0
    %1053 = vmatmul.mubr.bf16.gmra.mrb[0].mxu0 %v1006
    %v1054 = vpop.f32.mrb[0].mxu0
    %v1055 = vadd.f32 %v1018, %v1054
    %v1056 = vpop.f32.mrb[0].mxu0
    %v1057 = vpop.f32.mrb[0].mxu0
    %v1058 = vadd.f32 %v1018, %v1057
    %v1059 = vpop.f32.mrb[0].mxu0
    %1060 = vmatprep.mubr.bf16.mxu0 0
    %1061 = vmatmul.mubr.bf16.gmra.mrb[0].mxu0 %v1007
    %v1062 = vpop.f32.mrb[0].mxu0
    %v1063 = vadd.f32 %v1018, %v1062
    %v1064 = vpop.f32.mrb[0].mxu0
    %v1065 = vpop.f32.mrb[0].mxu0
    %v1066 = vadd.f32 %v1018, %v1065
    %v1067 = vpop.f32.mrb[0].mxu0
    %1068 = vmatprep.mubr.bf16.mxu0 0
    %1069 = vmatmul.mubr.bf16.gmra.mrb[0].mxu0 %v1008
    %v1070 = vpop.f32.mrb[0].mxu0
    %v1071 = vadd.f32 %v1018, %v1070
    %v1072 = vpop.f32.mrb[0].mxu0
    %v1073 = vpop.f32.mrb[0].mxu0
    %v1074 = vadd.f32 %v1018, %v1073
    %v1075 = vpop.f32.mrb[0].mxu0
    %1076 = vmatprep.mubr.bf16.mxu0 0
    %1077 = vmatmul.mubr.bf16.gmra.mrb[0].mxu0 %v1009
    %v1078 = vpop.f32.mrb[0].mxu0
    %v1079 = vadd.f32 %v1018, %v1078
    %v1080 = vpop.f32.mrb[0].mxu0
    %v1081 = vpop.f32.mrb[0].mxu0
    %v1082 = vadd.f32 %v1018, %v1081
    %v1083 = vpop.f32.mrb[0].mxu0
    %1084 = vmatprep.mubr.bf16.mxu0 0
    %1085 = vmatmul.mubr.bf16.gmra.mrb[0].mxu0 %v1010
    %v1086 = vpop.f32.mrb[0].mxu0
    %v1087 = vadd.f32 %v1018, %v1086
    %v1088 = vpop.f32.mrb[0].mxu0
    %v1089 = vpop.f32.mrb[0].mxu0
    %v1090 = vadd.f32 %v1018, %v1089
    %v1091 = vpop.f32.mrb[0].mxu0
    %1092 = vmatprep.mubr.bf16.mxu0 0
    %1093 = vmatmul.mubr.bf16.gmra.mrb[0].mxu0 %v1011
    %v1094 = vpop.f32.mrb[0].mxu0
    %v1095 = vadd.f32 %v1018, %v1094
    %v1096 = vpop.f32.mrb[0].mxu0
    %v1097 = vpop.f32.mrb[0].mxu0
    %v1098 = vadd.f32 %v1018, %v1097
    %v1099 = vpop.f32.mrb[0].mxu0
    %1100 = vmatprep.mubr.bf16.mxu0 0
    %1101 = vmatmul.mubr.bf16.gmra.mrb[0].mxu0 %v1012
    %v1102 = vpop.f32.mrb[0].mxu0
    %v1103 = vadd.f32 %v1018, %v1102
    %v1104 = vpop.f32.mrb[0].mxu0
    %v1105 = vpop.f32.mrb[0].mxu0
    %v1106 = vadd.f32 %v1018, %v1105
    %v1107 = vpop.f32.mrb[0].mxu0
    %1108 = vmatprep.mubr.bf16.mxu0 0
    %1109 = vmatmul.mubr.bf16.gmra.mrb[0].mxu0 %v1013
    %v1110 = vpop.f32.mrb[0].mxu0
    %v1111 = vadd.f32 %v1018, %v1110
    %v1112 = vpop.f32.mrb[0].mxu0
    %v1113 = vpop.f32.mrb[0].mxu0
    %v1114 = vadd.f32 %v1018, %v1113
    %v1115 = vpop.f32.mrb[0].mxu0
    %1116 = vdwg.mxu0
    %1117 = vst [vmem:[#allocation11] sm:$0xff] %v1055
    %1118 = vst [vmem:[#allocation11 + $0x8] sm:$0xff] %v1058
    %1119 = vst [vmem:[#allocation11 + $0x10] sm:$0xff] %v1063
    %1120 = vst [vmem:[#allocation11 + $0x18] sm:$0xff] %v1066
    %1121 = vst [vmem:[#allocation11 + $0x20] sm:$0xff] %v1071
    %1122 = vst [vmem:[#allocation11 + $0x28] sm:$0xff] %v1074
    %1123 = vst [vmem:[#allocation11 + $0x30] sm:$0xff] %v1079
    %1124 = vst [vmem:[#allocation11 + $0x38] sm:$0xff] %v1082
    %1125 = vst [vmem:[#allocation11 + $0x40] sm:$0xff] %v1087
    %1126 = vst [vmem:[#allocation11 + $0x48] sm:$0xff] %v1090
    %1127 = vst [vmem:[#allocation11 + $0x50] sm:$0xff] %v1095
    %1128 = vst [vmem:[#allocation11 + $0x58] sm:$0xff] %v1098
    %1129 = vst [vmem:[#allocation11 + $0x60] sm:$0xff] %v1103
    %1130 = vst [vmem:[#allocation11 + $0x68] sm:$0xff] %v1106
    %1131 = vst [vmem:[#allocation11 + $0x70] sm:$0xff] %v1111
    %1132 = vst [vmem:[#allocation11 + $0x78] sm:$0xff] %v1114
    // Predicated region
    $region76: #{_gcn_apply.1} parent=1 // pred_check
      _
    $region77: #{_gcn_apply.1} parent=1 // pred_check_branch
      %1134 = sbr.rel (0) target = $region79
    $region78: #{_gcn_apply.1} parent=1 // pred_region
      %s1136 = ssub.s32 2048, 2048
      %1137 = vsyncadd [#allocation7], %s1136
      %s1138 = sshll.u32 [#allocation11], 4
      %s1139 = int_to_ptr.vmem [resolvable:$true] %s1138
      %1144 = dma.vmem_to_hbm [thread:$0]  %s1139, 2048, %s8, [#allocation7], 128, 128, 8
    $region79: #{_gcn_apply.1} parent=1 // pred_fallthru
      _
    // Predicated region
    $region80: #{_gcn_apply.1} parent=1 // pred_check
      _
    $region81: #{_gcn_apply.1} parent=1 // pred_check_branch
      %1146 = sbr.rel (0) target = $region83
    $region82: #{_gcn_apply.1} parent=1 // pred_region
      %1147 = dma.done [#allocation7], 2048
    $region83: #{_gcn_apply.1} parent=1 // pred_fallthru
      _
    %1148 = vsyncpa [#allocation6], 1
    %1149 = vsyncpa [#allocation9], 1
    %1150 = vsyncpa [#allocation7], 1
  %1151 = vsyncmov [#allocation4]
  %s1152 = vpop.sfrf %1151
  %p1153 = scmp.eq.s32.totalorder %s1152, 0
  %p1154 = pneg %p1153
  %1156 = shalt.err (%p1154)

</llo_original>
